<compile_context>
chip_gen: v6e
topology: v6e:2x2x1
jax: 0.10.0
libtpu: 0.0.40
codegen_flags: <defaults>
</compile_context>

<pallas_src>
import functools

import jax
import jax.numpy as jnp
from jax.experimental import pallas as pl
from jax.experimental.pallas import tpu as pltpu


def _round_up(x, m):
    return ((x + m - 1) // m) * m


def _cdiv(a, b):
    return -(-a // b)


def _kernel_with_feat(x_ref, wb_ref, bb_ref, wc_ref, bc_ref,
                      feat_ref, logit_ref):
    """Fused backbone lift + fused seg heads, channel-major.

    x_ref     : (C_in,  TN)    point features, points on the lane axis
    wb_ref    : (C_feat, C_in) backbone (stand-in) weight, pre-transposed
    bb_ref    : (C_feat, 1)    f32 backbone bias
    wc_ref    : (C_out, C_in)  pre-fused head weight (= W_head^T @ W_backbone^T)
    bc_ref    : (C_out, 1)     f32 pre-fused head bias
    feat_ref  : (C_feat, TN)   output features (lane-dense)
    logit_ref : (C_out, TN)    output logits, both heads concatenated
    """
    x = x_ref[...]
    # Both matmuls consume the same x tile -> back-to-back MXU passes,
    # no serial feats->logits chain.
    feat = jnp.dot(wb_ref[...], x, preferred_element_type=jnp.float32) + bb_ref[...]
    logit = jnp.dot(wc_ref[...], x, preferred_element_type=jnp.float32) + bc_ref[...]
    feat_ref[...] = feat.astype(feat_ref.dtype)
    logit_ref[...] = logit.astype(logit_ref.dtype)


def _kernel_logits_only(x_ref, wc_ref, bc_ref, logit_ref):
    logit_ref[...] = (
        jnp.dot(wc_ref[...], x_ref[...], preferred_element_type=jnp.float32)
        + bc_ref[...]).astype(logit_ref.dtype)


@functools.partial(
    jax.jit,
    static_argnames=("tile_n", "dual_head", "return_feat",
                     "channel_major_out", "compute_dtype", "out_dtype"))
def net3dseg_forward(x, params, *, tile_n=16384, dual_head=True,
                     return_feat=True, channel_major_out=False,
                     compute_dtype=jnp.float32, out_dtype=jnp.float32):
    """Net3DSeg forward.

    x      : (N, C_in) float32 per-point features (data_batch['x'] features).
    params : dict with wb (C_in,C_feat), bb (C_feat,), w1 (C_feat,NCLS),
             b1 (NCLS,), w2 (C_feat,NCLS), b2 (NCLS,).
    Returns {'feat', 'seg_logit'[, 'seg_logit2']}; point-major (N, C) by
    default, channel-major (C, N) with channel_major_out=True (no wrapper
    transposes in that case).
    """
    n, c_in = x.shape
    c_feat = params["wb"].shape[1]
    ncls = params["w1"].shape[1]

    # --- weight prep (tiny, f32) ----------------------------------------
    wb_t = params["wb"].T.astype(jnp.float32)                 # (C_feat, C_in)
    bb = params["bb"].reshape(c_feat, 1).astype(jnp.float32)
    if dual_head:
        wh_t = jnp.concatenate([params["w1"], params["w2"]], axis=1).T
        bh = jnp.concatenate([params["b1"], params["b2"]]).reshape(-1, 1)
    else:
        wh_t = params["w1"].T
        bh = params["b1"].reshape(ncls, 1)
    wh_t = wh_t.astype(jnp.float32)
    bh = bh.astype(jnp.float32)
    n_out = wh_t.shape[0]
    # logits = wh_t @ (wb_t @ x + bb) + bh == (wh_t @ wb_t) @ x + (wh_t @ bb + bh)
    wc = wh_t @ wb_t                                           # (C_out, C_in)
    bc = wh_t @ bb + bh                                        # (C_out, 1)

    # Streamed operands optionally in bf16; biases stay f32 (accumulation f32).
    wb_k = wb_t.astype(compute_dtype)
    wc_k = wc.astype(compute_dtype)

    # --- adaptive lane-dense tiling --------------------------------------
    in_bytes = jnp.dtype(compute_dtype).itemsize
    out_bytes = jnp.dtype(out_dtype).itemsize
    per_point = (c_in * in_bytes + n_out * out_bytes
                 + (c_feat * out_bytes if return_feat else 0))
    # Double-buffered working set capped at ~24 MiB (under the 32 MiB scoped
    # VMEM default on v5e/v6e/v7x), tiles rounded to 512 points.
    max_tile = max(512, ((24 << 20) // (2 * per_point)) // 512 * 512)
    padded0 = _round_up(n, 512)
    target = min(tile_n, max_tile)
    n_steps = max(2, _cdiv(padded0, target))   # >= 2 grid steps for v7x megacore
    tile = max(512, min(_round_up(_cdiv(padded0, n_steps), 512), max_tile))
    padded_n = _round_up(n, tile)
    grid = (padded_n // tile,)

    # Single layout copy for x: pad + transpose + cast fused by XLA.
    x_cm = jnp.pad(x, ((0, padded_n - n), (0, 0))).T.astype(compute_dtype)

    def rep(shape):
        return pl.BlockSpec(shape, lambda i: (0, 0))

    flops = 2 * padded_n * c_in * (n_out + (c_feat if return_feat else 0))
    bytes_accessed = (padded_n * per_point
                      + c_in * (c_feat + n_out) * in_bytes
                      + (c_feat + n_out) * 4)

    if return_feat:
        kernel = _kernel_with_feat
        inputs = (x_cm, wb_k, bb, wc_k, bc)
        in_specs = [
            pl.BlockSpec((c_in, tile), lambda i: (0, i)),      # x (chan-major)
            rep((c_feat, c_in)),                               # wb^T
            rep((c_feat, 1)),                                  # bb
            rep((n_out, c_in)),                                # fused W_cls
            rep((n_out, 1)),                                   # fused b_cls
        ]
        out_shape = (
            jax.ShapeDtypeStruct((c_feat, padded_n), out_dtype),
            jax.ShapeDtypeStruct((n_out, padded_n), out_dtype),
        )
        out_specs = [
            pl.BlockSpec((c_feat, tile), lambda i: (0, i)),
            pl.BlockSpec((n_out, tile), lambda i: (0, i)),
        ]
    else:
        kernel = _kernel_logits_only
        inputs = (x_cm, wc_k, bc)
        in_specs = [
            pl.BlockSpec((c_in, tile), lambda i: (0, i)),
            rep((n_out, c_in)),
            rep((n_out, 1)),
        ]
        out_shape = (jax.ShapeDtypeStruct((n_out, padded_n), out_dtype),)
        out_specs = [pl.BlockSpec((n_out, tile), lambda i: (0, i))]

    outs = pl.pallas_call(
        kernel,
        out_shape=out_shape,
        grid_spec=pltpu.PrefetchScalarGridSpec(
            num_scalar_prefetch=0,
            grid=grid,
            in_specs=in_specs,
            out_specs=out_specs,
        ),
        compiler_params=pltpu.CompilerParams(
            dimension_semantics=("parallel",)),
        cost_estimate=pl.CostEstimate(
            flops=flops, transcendentals=0, bytes_accessed=bytes_accessed),
    )(*inputs)

    if return_feat:
        feat_cm, logit_cm = outs
    else:
        logit_cm, = outs

    preds = {}
    if channel_major_out:
        # Lane-dense channel-major outputs; downstream consumer handles layout.
        if return_feat:
            preds["feat"] = feat_cm[:, :n]
        logit_cm = logit_cm[:, :n]
        preds["seg_logit"] = logit_cm[:ncls]
        if dual_head:
            preds["seg_logit2"] = logit_cm[ncls:]
    else:
        # PyTorch point-major API; slice before transposing (no dead columns).
        if return_feat:
            preds["feat"] = feat_cm[:, :n].T
        preds["seg_logit"] = logit_cm[:ncls, :n].T
        if dual_head:
            preds["seg_logit2"] = logit_cm[ncls:, :n].T
    return preds


def init_params(key, c_in, c_feat, ncls):
    """Deterministic synthetic parameters (module __init__ shapes)."""
    k = jax.random.split(key, 6)
    # Weights stored already transposed relative to torch nn.Linear (in, out),
    # so the reference computes x @ W + b == torch's x @ W_t.T + b.
    return {
        "wb": jax.random.normal(k[0], (c_in, c_feat), jnp.float32) * 0.1,
        "bb": jax.random.normal(k[1], (c_feat,), jnp.float32) * 0.1,
        "w1": jax.random.normal(k[2], (c_feat, ncls), jnp.float32) * 0.1,
        "b1": jax.random.normal(k[3], (ncls,), jnp.float32) * 0.1,
        "w2": jax.random.normal(k[4], (c_feat, ncls), jnp.float32) * 0.1,
        "b2": jax.random.normal(k[5], (ncls,), jnp.float32) * 0.1,
    }


if __name__ == "__main__":
    # Small but representative shapes: 4096 points, 4 input channels,
    # backbone out_channels = 16 (UNetSCN m), num_classes = 8, dual_head=True.
    N, C_IN, C_FEAT, NCLS = 4096, 4, 16, 8

    key = jax.random.PRNGKey(0)
    kx, kp = jax.random.split(key)
    x = jax.random.normal(kx, (N, C_IN), jnp.float32)
    params = init_params(kp, C_IN, C_FEAT, NCLS)

    # Plain-JAX reference.
    feat_ref = x @ params["wb"] + params["bb"]
    logit1_ref = feat_ref @ params["w1"] + params["b1"]
    logit2_ref = feat_ref @ params["w2"] + params["b2"]

    # 1) Default path: f32, PyTorch point-major API, dual head.
    preds = net3dseg_forward(x, params, dual_head=True)
    jax.block_until_ready(preds)
    assert preds["feat"].shape == (N, C_FEAT)
    assert preds["seg_logit"].shape == (N, NCLS)
    assert preds["seg_logit2"].shape == (N, NCLS)
    assert jnp.allclose(preds["feat"], feat_ref, atol=1e-4, rtol=1e-4)
    assert jnp.allclose(preds["seg_logit"], logit1_ref, atol=1e-4, rtol=1e-4)
    assert jnp.allclose(preds["seg_logit2"], logit2_ref, atol=1e-4, rtol=1e-4)

    # 2) Single-head variant (second head's weights fold away).
    preds1 = net3dseg_forward(x, params, dual_head=False)
    jax.block_until_ready(preds1)
    assert "seg_logit2" not in preds1
    assert jnp.allclose(preds1["seg_logit"], logit1_ref, atol=1e-4, rtol=1e-4)

    # 3) Fast path: bf16 streaming I/O, channel-major outputs, logits only
    #    (no wrapper transposes, no 'feat' store).
    preds_fast = net3dseg_forward(
        x, params, dual_head=True, return_feat=False, channel_major_out=True,
        compute_dtype=jnp.bfloat16, out_dtype=jnp.bfloat16)
    jax.block_until_ready(preds_fast)
    assert "feat" not in preds_fast
    assert preds_fast["seg_logit"].shape == (NCLS, N)
    assert preds_fast["seg_logit2"].shape == (NCLS, N)
    assert jnp.allclose(preds_fast["seg_logit"].astype(jnp.float32).T,
                        logit1_ref, atol=5e-2, rtol=5e-2)
    assert jnp.allclose(preds_fast["seg_logit2"].astype(jnp.float32).T,
                        logit2_ref, atol=5e-2, rtol=5e-2)

    print("KERNEL_OK")
</pallas_src>

<mosaic_0001>
module attributes {stable_mosaic.version = 11 : i64} {
  func.func @_kernel_with_feat(%arg0: i32, %arg1: memref<4x2048xf32, #tpu.memory_space<vmem>>, %arg2: memref<16x4xf32, #tpu.memory_space<vmem>>, %arg3: memref<16x1xf32, #tpu.memory_space<vmem>>, %arg4: memref<16x4xf32, #tpu.memory_space<vmem>>, %arg5: memref<16x1xf32, #tpu.memory_space<vmem>>, %arg6: memref<16x2048xf32, #tpu.memory_space<vmem>>, %arg7: memref<16x2048xf32, #tpu.memory_space<vmem>>) attributes {dimension_semantics = [#tpu.dimension_semantics<parallel>], iteration_bounds = array<i64: 2>, scalar_prefetch = 0 : i64, scratch_operands = 0 : i64, tpu.core_type = #tpu.core_type<tc>, window_params = [{transform_indices = @transform_0, window_bounds = array<i64: 4, 2048>}, {pipeline_mode = #tpu.pipeline_mode<synchronous>, transform_indices = @transform_1, window_bounds = array<i64: 16, 4>}, {pipeline_mode = #tpu.pipeline_mode<synchronous>, transform_indices = @transform_2, window_bounds = array<i64: 16, 1>}, {pipeline_mode = #tpu.pipeline_mode<synchronous>, transform_indices = @transform_3, window_bounds = array<i64: 16, 4>}, {pipeline_mode = #tpu.pipeline_mode<synchronous>, transform_indices = @transform_4, window_bounds = array<i64: 16, 1>}, {transform_indices = @transform_5, window_bounds = array<i64: 16, 2048>}, {transform_indices = @transform_6, window_bounds = array<i64: 16, 2048>}]} {
    %c0 = arith.constant 0 : index
    %c0_0 = arith.constant 0 : index
    %0 = vector.load %arg1[%c0, %c0_0] : memref<4x2048xf32, #tpu.memory_space<vmem>>, vector<4x2048xf32>
    %c0_1 = arith.constant 0 : index
    %c0_2 = arith.constant 0 : index
    %1 = vector.load %arg2[%c0_1, %c0_2] : memref<16x4xf32, #tpu.memory_space<vmem>>, vector<16x4xf32>
    %cst = arith.constant dense<0.000000e+00> : vector<16x2048xf32>
    %2 = tpu.matmul %1, %0, %cst {dimension_numbers = #tpu.dot_dimension_numbers<[1], [0], [0], [1], [0, 0, 1, 1], [], []>} : vector<16x4xf32>, vector<4x2048xf32>, vector<16x2048xf32> -> vector<16x2048xf32>
    %c0_3 = arith.constant 0 : index
    %c0_4 = arith.constant 0 : index
    %3 = vector.load %arg3[%c0_3, %c0_4] : memref<16x1xf32, #tpu.memory_space<vmem>>, vector<16x1xf32>
    %4 = vector.broadcast %3 : vector<16x1xf32> to vector<16x2048xf32>
    %5 = arith.addf %2, %4 : vector<16x2048xf32>
    %c0_5 = arith.constant 0 : index
    %c0_6 = arith.constant 0 : index
    %6 = vector.load %arg4[%c0_5, %c0_6] : memref<16x4xf32, #tpu.memory_space<vmem>>, vector<16x4xf32>
    %cst_7 = arith.constant dense<0.000000e+00> : vector<16x2048xf32>
    %7 = tpu.matmul %6, %0, %cst_7 {dimension_numbers = #tpu.dot_dimension_numbers<[1], [0], [0], [1], [0, 0, 1, 1], [], []>} : vector<16x4xf32>, vector<4x2048xf32>, vector<16x2048xf32> -> vector<16x2048xf32>
    %c0_8 = arith.constant 0 : index
    %c0_9 = arith.constant 0 : index
    %8 = vector.load %arg5[%c0_8, %c0_9] : memref<16x1xf32, #tpu.memory_space<vmem>>, vector<16x1xf32>
    %9 = vector.broadcast %8 : vector<16x1xf32> to vector<16x2048xf32>
    %10 = arith.addf %7, %9 : vector<16x2048xf32>
    %c0_10 = arith.constant 0 : index
    %c0_11 = arith.constant 0 : index
    %11 = vector.load %arg6[%c0_10, %c0_11] : memref<16x2048xf32, #tpu.memory_space<vmem>>, vector<16x2048xf32>
    tpu.vector_store %arg6[%c0_10, %c0_11], %5 {strides = array<i32>} : memref<16x2048xf32, #tpu.memory_space<vmem>>, vector<16x2048xf32>,
    %c0_12 = arith.constant 0 : index
    %c0_13 = arith.constant 0 : index
    %12 = vector.load %arg7[%c0_12, %c0_13] : memref<16x2048xf32, #tpu.memory_space<vmem>>, vector<16x2048xf32>
    tpu.vector_store %arg7[%c0_12, %c0_13], %10 {strides = array<i32>} : memref<16x2048xf32, #tpu.memory_space<vmem>>, vector<16x2048xf32>,
    return
  }
  func.func @transform_0(%arg0: i32) -> (i32, i32) {
    %c0_i32 = arith.constant 0 : i32
    %c0_i32_0 = arith.constant 0 : i32
    return %c0_i32, %arg0 : i32, i32
  }
  func.func @transform_1(%arg0: i32) -> (i32, i32) {
    %c0_i32 = arith.constant 0 : i32
    %c0_i32_0 = arith.constant 0 : i32
    %c0_i32_1 = arith.constant 0 : i32
    return %c0_i32, %c0_i32_0 : i32, i32
  }
  func.func @transform_2(%arg0: i32) -> (i32, i32) {
    %c0_i32 = arith.constant 0 : i32
    %c0_i32_0 = arith.constant 0 : i32
    %c0_i32_1 = arith.constant 0 : i32
    return %c0_i32, %c0_i32_0 : i32, i32
  }
  func.func @transform_3(%arg0: i32) -> (i32, i32) {
    %c0_i32 = arith.constant 0 : i32
    %c0_i32_0 = arith.constant 0 : i32
    %c0_i32_1 = arith.constant 0 : i32
    return %c0_i32, %c0_i32_0 : i32, i32
  }
  func.func @transform_4(%arg0: i32) -> (i32, i32) {
    %c0_i32 = arith.constant 0 : i32
    %c0_i32_0 = arith.constant 0 : i32
    %c0_i32_1 = arith.constant 0 : i32
    return %c0_i32, %c0_i32_0 : i32, i32
  }
  func.func @transform_5(%arg0: i32) -> (i32, i32) {
    %c0_i32 = arith.constant 0 : i32
    %c0_i32_0 = arith.constant 0 : i32
    return %c0_i32, %arg0 : i32, i32
  }
  func.func @transform_6(%arg0: i32) -> (i32, i32) {
    %c0_i32 = arith.constant 0 : i32
    %c0_i32_0 = arith.constant 0 : i32
    return %c0_i32, %arg0 : i32, i32
  }
}

</mosaic_0001>

<llo_original>
// kernel: net3dseg_forward.1
$region0: #{net3dseg_forward.1}
  #allocation0 [shape = 'u32[]', space=smem, size = 0x4, offset = 0x4, fixed_abs, tag = 'smem constant byte address 0x4 - core index']
  #allocation1 [shape = 'u32[144,128]{1,0:T(1,128)}', space=vmem, size = 0x12000, scoped, tag = 'internal scratch']
  %s0 = inlined_call_operand.vmem [shape: f32[4,4096], index: 0, kind: input, shape index: {}]
  %s1 = inlined_call_operand.vmem [shape: f32[16,4], index: 1, kind: input, shape index: {}]
  %s2 = inlined_call_operand.vmem [shape: f32[16,1], index: 2, kind: input, shape index: {}]
  %s3 = inlined_call_operand.vmem [shape: f32[16,4], index: 3, kind: input, shape index: {}]
  %s4 = inlined_call_operand.vmem [shape: f32[16,1], index: 4, kind: input, shape index: {}]
  %s5 = inlined_call_operand.hbm [shape: f32[16,4096], index: 5, kind: output, shape index: {0}]
  %s6 = inlined_call_operand.vmem [shape: f32[16,4096], index: 6, kind: output, shape index: {1}]
  %7 = xla_tuple %s5, %s6
  %s8 = sld [smem:[#allocation0]]
  $region80: #{net3dseg_forward.1} parent=0
    _
  %s10 = ssub.s32 1, %s8
  %s11 = scalar_select 0, %s10, %s8
  $region1: #{net3dseg_forward.1} parent=0
    #allocation2 [shape = 'u8[262144]{0}', space=vmem, size = 0x40000, scoped, tag = 'output window, operand 0']
    #allocation3 [shape = 's32[2]{0}', space=sflag, size = 0x8, scoped, tag = 'scoped memory for net3dseg_forward.1']
    #allocation4 [shape = 'u8[262144]{0}', space=vmem, size = 0x40000, scoped, tag = 'output window, operand 1']
    %12 = vsyncpa [#allocation3], 0
    %s13 = scalar_lea.sflag [#allocation3], 1
    %14 = vsyncpa %s13, 0
    loop: start=0, step=1, limit=4
    $region2: #{net3dseg_forward.1} parent=1 // loop_pre_header
      _
    $region3: #{net3dseg_forward.1} parent=1 // loop_header
      %s16 = sphi 0, %s20
      %p17 = scmp.ge.s32.totalorder %s16, 4
      %s26 = sphi 0, %s28
      %s29 = sphi 0, %s26
      %s30 = sphi 0, %s29
      %s46 = sphi 0, %s30
      %s50 = sphi 0, %s50
      %s52 = sphi 0, %s50
      %s53 = sphi 0, %s52
      %s67 = sphi 0, %s53
      %s71 = sphi 0, %s71
      %s73 = sphi 0, %s71
      %s74 = sphi 0, %s73
      %s88 = sphi 0, %s74
      %s92 = sphi 0, %s92
      %s94 = sphi 0, %s92
      %s95 = sphi 0, %s94
      %s109 = sphi 0, %s95
      %s113 = sphi 0, %s113
      %s115 = sphi 0, %s113
      %s116 = sphi 0, %s115
      %s130 = sphi 0, %s116
      %s136 = sphi 0, %s138
      %s139 = sphi 0, %s136
      %s140 = sphi 0, %s139
      %s156 = sphi 0, %s140
      %s162 = sphi 0, %s164
      %s165 = sphi 0, %s162
      %s166 = sphi 0, %s165
      %s182 = sphi 0, %s166
    $region4: #{net3dseg_forward.1} parent=1 // loop_header_branch
      %19 = sbr.rel (%p17) target = $region8
    $region5: #{net3dseg_forward.1} parent=1 // loop_body
      %s21 = ssub.s32 %s16, 1
      %s22 = ssub.s32 %s16, 2
      %s23 = sadd.s32 %s16, 1
      %s24 = ssub.s32 %s16, %s23
      %p25 = scmp.eq.s32.totalorder %s24, 0
      %s27 = sadd.s32 %s26, 1
      %s28 = scalar_select %p25, %s26, %s27
      %p31 = pneg %p25
      %p32 = scmp.eq.s32.totalorder %s16, 1
      %p33 = por %p31, %p32
      %p34 = scmp.ne.s32.totalorder %s26, %s29
      %p35 = scmp.eq.s32.totalorder %s16, 0
      %p36 = por %p34, %p35
      %p37 = scmp.ne.s32.totalorder %s26, %s29
      %p38 = scmp.eq.s32.totalorder %s21, 1
      %p39 = por %p37, %p38
      %p40 = scmp.ne.s32.totalorder %s29, %s30
      %p41 = scmp.eq.s32.totalorder %s21, 0
      %p42 = por %p40, %p41
      %p43 = scmp.ne.s32.totalorder %s29, %s30
      %p44 = scmp.eq.s32.totalorder %s22, 1
      %p45 = por %p43, %p44
      %p47 = scmp.ne.s32.totalorder %s30, %s46
      %p48 = scmp.eq.s32.totalorder %s22, 0
      %p49 = por %p47, %p48
      %s51 = sadd.s32 %s50, 1
      %p54 = scmp.eq.s32.totalorder %s16, 1
      %p55 = scmp.ne.s32.totalorder %s50, %s52
      %p56 = scmp.eq.s32.totalorder %s16, 0
      %p57 = por %p55, %p56
      %p58 = scmp.ne.s32.totalorder %s50, %s52
      %p59 = scmp.eq.s32.totalorder %s21, 1
      %p60 = por %p58, %p59
      %p61 = scmp.ne.s32.totalorder %s52, %s53
      %p62 = scmp.eq.s32.totalorder %s21, 0
      %p63 = por %p61, %p62
      %p64 = scmp.ne.s32.totalorder %s52, %s53
      %p65 = scmp.eq.s32.totalorder %s22, 1
      %p66 = por %p64, %p65
      %p68 = scmp.ne.s32.totalorder %s53, %s67
      %p69 = scmp.eq.s32.totalorder %s22, 0
      %p70 = por %p68, %p69
      %s72 = sadd.s32 %s71, 1
      %p75 = scmp.eq.s32.totalorder %s16, 1
      %p76 = scmp.ne.s32.totalorder %s71, %s73
      %p77 = scmp.eq.s32.totalorder %s16, 0
      %p78 = por %p76, %p77
      %p79 = scmp.ne.s32.totalorder %s71, %s73
      %p80 = scmp.eq.s32.totalorder %s21, 1
      %p81 = por %p79, %p80
      %p82 = scmp.ne.s32.totalorder %s73, %s74
      %p83 = scmp.eq.s32.totalorder %s21, 0
      %p84 = por %p82, %p83
      %p85 = scmp.ne.s32.totalorder %s73, %s74
      %p86 = scmp.eq.s32.totalorder %s22, 1
      %p87 = por %p85, %p86
      %p89 = scmp.ne.s32.totalorder %s74, %s88
      %p90 = scmp.eq.s32.totalorder %s22, 0
      %p91 = por %p89, %p90
      %s93 = sadd.s32 %s92, 1
      %p96 = scmp.eq.s32.totalorder %s16, 1
      %p97 = scmp.ne.s32.totalorder %s92, %s94
      %p98 = scmp.eq.s32.totalorder %s16, 0
      %p99 = por %p97, %p98
      %p100 = scmp.ne.s32.totalorder %s92, %s94
      %p101 = scmp.eq.s32.totalorder %s21, 1
      %p102 = por %p100, %p101
      %p103 = scmp.ne.s32.totalorder %s94, %s95
      %p104 = scmp.eq.s32.totalorder %s21, 0
      %p105 = por %p103, %p104
      %p106 = scmp.ne.s32.totalorder %s94, %s95
      %p107 = scmp.eq.s32.totalorder %s22, 1
      %p108 = por %p106, %p107
      %p110 = scmp.ne.s32.totalorder %s95, %s109
      %p111 = scmp.eq.s32.totalorder %s22, 0
      %p112 = por %p110, %p111
      %s114 = sadd.s32 %s113, 1
      %p117 = scmp.eq.s32.totalorder %s16, 1
      %p118 = scmp.ne.s32.totalorder %s113, %s115
      %p119 = scmp.eq.s32.totalorder %s16, 0
      %p120 = por %p118, %p119
      %p121 = scmp.ne.s32.totalorder %s113, %s115
      %p122 = scmp.eq.s32.totalorder %s21, 1
      %p123 = por %p121, %p122
      %p124 = scmp.ne.s32.totalorder %s115, %s116
      %p125 = scmp.eq.s32.totalorder %s21, 0
      %p126 = por %p124, %p125
      %p127 = scmp.ne.s32.totalorder %s115, %s116
      %p128 = scmp.eq.s32.totalorder %s22, 1
      %p129 = por %p127, %p128
      %p131 = scmp.ne.s32.totalorder %s116, %s130
      %p132 = scmp.eq.s32.totalorder %s22, 0
      %p133 = por %p131, %p132
      %s134 = ssub.s32 %s16, %s23
      %p135 = scmp.eq.s32.totalorder %s134, 0
      %s137 = sadd.s32 %s136, 1
      %s138 = scalar_select %p135, %s136, %s137
      %p141 = pneg %p135
      %p142 = scmp.eq.s32.totalorder %s16, 1
      %p143 = por %p141, %p142
      %p144 = scmp.ne.s32.totalorder %s136, %s139
      %p145 = scmp.eq.s32.totalorder %s16, 0
      %p146 = por %p144, %p145
      %p147 = scmp.ne.s32.totalorder %s136, %s139
      %p148 = scmp.eq.s32.totalorder %s21, 1
      %p149 = por %p147, %p148
      %p150 = scmp.ne.s32.totalorder %s139, %s140
      %p151 = scmp.eq.s32.totalorder %s21, 0
      %p152 = por %p150, %p151
      %p153 = scmp.ne.s32.totalorder %s139, %s140
      %p154 = scmp.eq.s32.totalorder %s22, 1
      %p155 = por %p153, %p154
      %p157 = scmp.ne.s32.totalorder %s140, %s156
      %p158 = scmp.eq.s32.totalorder %s22, 0
      %p159 = por %p157, %p158
      %s160 = ssub.s32 %s16, %s23
      %p161 = scmp.eq.s32.totalorder %s160, 0
      %s163 = sadd.s32 %s162, 1
      %s164 = scalar_select %p161, %s162, %s163
      %p167 = pneg %p161
      %p168 = scmp.eq.s32.totalorder %s16, 1
      %p169 = por %p167, %p168
      %p170 = scmp.ne.s32.totalorder %s162, %s165
      %p171 = scmp.eq.s32.totalorder %s16, 0
      %p172 = por %p170, %p171
      %p173 = scmp.ne.s32.totalorder %s162, %s165
      %p174 = scmp.eq.s32.totalorder %s21, 1
      %p175 = por %p173, %p174
      %p176 = scmp.ne.s32.totalorder %s165, %s166
      %p177 = scmp.eq.s32.totalorder %s21, 0
      %p178 = por %p176, %p177
      %p179 = scmp.ne.s32.totalorder %s165, %s166
      %p180 = scmp.eq.s32.totalorder %s22, 1
      %p181 = por %p179, %p180
      %p183 = scmp.ne.s32.totalorder %s166, %s182
      %p184 = scmp.eq.s32.totalorder %s22, 0
      %p185 = por %p183, %p184
      %p186 = scmp.le.s32.totalorder 1, %s16
      %p187 = scmp.lt.s32.totalorder %s16, 3
      %p188 = pnand %p186, %p187
      %p189 = pneg %p188
      // Predicated region
      $region9: #{net3dseg_forward.1} parent=5 // pred_check
        _
      $region10: #{net3dseg_forward.1} parent=5 // pred_check_branch
        %191 = sbr.rel (%p188) target = $region12
      $region11: #{net3dseg_forward.1} parent=5 // pred_region
        %s192 = ssub.s32 %s16, 1
        // Predicated region
        $region13: #{net3dseg_forward.1} parent=11 // pred_check
          %p193 = pneg %p63
        $region14: #{net3dseg_forward.1} parent=11 // pred_check_branch
          %195 = sbr.rel (%p193) target = $region16
        $region15: #{net3dseg_forward.1} parent=11 // pred_region
          _
        $region16: #{net3dseg_forward.1} parent=11 // pred_fallthru
          _
        // Predicated region
        $region17: #{net3dseg_forward.1} parent=11 // pred_check
          %p196 = pneg %p84
        $region18: #{net3dseg_forward.1} parent=11 // pred_check_branch
          %198 = sbr.rel (%p196) target = $region20
        $region19: #{net3dseg_forward.1} parent=11 // pred_region
          _
        $region20: #{net3dseg_forward.1} parent=11 // pred_fallthru
          _
        // Predicated region
        $region21: #{net3dseg_forward.1} parent=11 // pred_check
          %p199 = pneg %p105
        $region22: #{net3dseg_forward.1} parent=11 // pred_check_branch
          %201 = sbr.rel (%p199) target = $region24
        $region23: #{net3dseg_forward.1} parent=11 // pred_region
          _
        $region24: #{net3dseg_forward.1} parent=11 // pred_fallthru
          _
        // Predicated region
        $region25: #{net3dseg_forward.1} parent=11 // pred_check
          %p202 = pneg %p126
        $region26: #{net3dseg_forward.1} parent=11 // pred_check_branch
          %204 = sbr.rel (%p202) target = $region28
        $region27: #{net3dseg_forward.1} parent=11 // pred_region
          _
        $region28: #{net3dseg_forward.1} parent=11 // pred_fallthru
          _
      $region12: #{net3dseg_forward.1} parent=5 // pred_fallthru
        _
      %p205 = scmp.lt.s32.totalorder %s16, 2
      // Predicated region
      $region29: #{net3dseg_forward.1} parent=5 // pred_check
        %p206 = pneg %p205
      $region30: #{net3dseg_forward.1} parent=5 // pred_check_branch
        %208 = sbr.rel (%p206) target = $region32
      $region31: #{net3dseg_forward.1} parent=5 // pred_region
        // Predicated region
        $region33: #{net3dseg_forward.1} parent=31 // pred_check
          %p209 = pneg %p36
        $region34: #{net3dseg_forward.1} parent=31 // pred_check_branch
          %211 = sbr.rel (%p209) target = $region36
        $region35: #{net3dseg_forward.1} parent=31 // pred_region
          %s212 = smul.u32 16, %s16
          %p213 = scmp.lt.s32.totalorder %s212, 31
          %s214 = scalar_select %p213, %s212, 31
          %s215 = smul.addr %s214, 4
          %s216 = scalar_lea.vmem %s0, %s215
          %s217 = smul.u32 16, %s16
        $region36: #{net3dseg_forward.1} parent=31 // pred_fallthru
          _
      $region32: #{net3dseg_forward.1} parent=5 // pred_fallthru
        _
      %p218 = scmp.le.s32.totalorder 1, %s16
      %p219 = scmp.lt.s32.totalorder %s16, 3
      %p220 = pnand %p218, %p219
      %p221 = pneg %p220
      // Predicated region
      $region37: #{net3dseg_forward.1} parent=5 // pred_check
        _
      $region38: #{net3dseg_forward.1} parent=5 // pred_check_branch
        %223 = sbr.rel (%p220) target = $region40
      $region39: #{net3dseg_forward.1} parent=5 // pred_region
        %s224 = ssub.s32 %s16, 1
        %s225 = smul.u32 16, %s21
        %p226 = scmp.lt.s32.totalorder %s225, 31
        %s227 = scalar_select %p226, %s225, 31
        %s228 = smul.addr %s227, 4
        %s229 = scalar_lea.vmem %s0, %s228
        %p230 = pneg %p42
        %p231 = pneg %p39
        %p232 = pneg %p63
        %p233 = pneg %p60
        %p234 = pneg %p84
        %p235 = pneg %p81
        %p236 = pneg %p105
        %p237 = pneg %p102
        %p238 = pneg %p126
        %p239 = pneg %p123
        %p240 = pneg %p152
        %p241 = pneg %p149
        %s242 = sand.u32 %s139, 1
        %s243 = scalar_lea.sflag [#allocation3], %s242
        %s244 = sand.u32 %s139, 1
        %s245 = smul.addr %s244, 256
        %s246 = scalar_lea.vmem [#allocation2], %s245
        %p247 = pneg %p178
        %p248 = pneg %p175
        %s249 = sand.u32 %s165, 1
        %s250 = sand.u32 %s165, 1
        %s251 = smul.addr %s250, 256
        %s252 = scalar_lea.vmem [#allocation4], %s251
        %s253 = smul.u32 16, %s21
        %p254 = scmp.lt.s32.totalorder %s253, 31
        %s255 = scalar_select %p254, %s253, 31
        %s256 = smul.addr %s255, 4
        %s257 = scalar_lea.vmem %s0, %s256
        %s258 = smul.u32 16, %s21
        %s259 = smul.u32 16, %s21
        %s260 = smul.u32 16, %s21
        %v261 = vld [vmem:[%s257] sm:$0xff]
        %v262 = vld [vmem:[%s257 + $0x8] sm:$0xff]
        %v263 = vld [vmem:[%s257 + $0x10] sm:$0xff]
        %v264 = vld [vmem:[%s257 + $0x18] sm:$0xff]
        %v265 = vld [vmem:[%s257 + $0x20] sm:$0xff]
        %v266 = vld [vmem:[%s257 + $0x28] sm:$0xff]
        %v267 = vld [vmem:[%s257 + $0x30] sm:$0xff]
        %v268 = vld [vmem:[%s257 + $0x38] sm:$0xff]
        %v269 = vld [vmem:[%s1] sm:$0xff]
        %v270 = vld [vmem:[%s1 + $0x8] sm:$0xff]
        %v271 = vld [vmem:[%s2] sm:$0xff]
        %v272 = vld [vmem:[%s2 + $0x8] sm:$0xff]
        %274 = vset.pattern.permute.xlu0 0
        %275 = vperm.xlu0 %274, %v271
        %v276 = vpop.permute.xlu0 %275
        %279 = vset.pattern.permute.xlu0 0
        %280 = vperm.xlu0 %279, %v272
        %v281 = vpop.permute.xlu0 %280
        %v291 = vcombine.high %v261, %v261
        %v292 = vcombine.high %v262, %v262
        %v293 = vcombine.high %v263, %v263
        %v294 = vcombine.high %v264, %v264
        %v295 = vcombine.high %v265, %v265
        %v296 = vcombine.high %v266, %v266
        %v297 = vcombine.high %v267, %v267
        %v298 = vcombine.high %v268, %v268
        %vm299 = vcmask 31744
        %v301 = vsel %vm299, %v269, 0
        %v304 = vsel %vm299, %v270, 0
        %vm306 = vcmask 1043456
        %v307 = vsel %vm306, %v261, 0
        %v309 = vsel %vm306, %v291, 0
        %v311 = vsel %vm306, %v262, 0
        %v313 = vsel %vm306, %v292, 0
        %v315 = vsel %vm306, %v263, 0
        %v317 = vsel %vm306, %v293, 0
        %v319 = vsel %vm306, %v264, 0
        %v321 = vsel %vm306, %v294, 0
        %v323 = vsel %vm306, %v265, 0
        %v325 = vsel %vm306, %v295, 0
        %v327 = vsel %vm306, %v266, 0
        %v329 = vsel %vm306, %v296, 0
        %v331 = vsel %vm306, %v267, 0
        %v333 = vsel %vm306, %v297, 0
        %v335 = vsel %vm306, %v268, 0
        %v337 = vsel %vm306, %v298, 0
        %339 = vmatprep.subr.mxu0 0.0
        %340 = vmatpush1.msra.mxu0 0.0
        %341 = vmatprep.subr.mxu0 0.0
        %342 = vmatpush1.msra.mxu0 0.0
        %343 = vmatprep.subr.mxu0 0.0
        %344 = vmatpush1.msra.mxu0 0.0
        %345 = vmatprep.subr.mxu0 0.0
        %346 = vmatpush1.msra.mxu0 0.0
        %347 = vmatprep.subr.mxu0 0.0
        %348 = vmatpush1.msra.mxu0 0.0
        %349 = vmatprep.subr.mxu0 0.0
        %350 = vmatpush1.msra.mxu0 0.0
        %351 = vmatprep.subr.mxu0 0.0
        %352 = vmatpush1.msra.mxu0 0.0
        %353 = vmatprep.subr.mxu0 0.0
        %354 = vmatpush1.msra.mxu0 0.0
        %355 = vmatprep.subr.mxu0 0.0
        %356 = vmatpush1.msra.mxu0 0.0
        %357 = vmatprep.subr.mxu0 0.0
        %358 = vmatpush1.msra.mxu0 0.0
        %359 = vmatprep.subr.mxu0 0.0
        %360 = vmatpush1.msra.mxu0 0.0
        %361 = vmatprep.subr.mxu0 0.0
        %362 = vmatpush1.msra.mxu0 0.0
        %363 = vmatprep.subr.mxu0 0.0
        %364 = vmatpush1.msra.mxu0 0.0
        %365 = vmatprep.subr.mxu0 0.0
        %366 = vmatpush1.msra.mxu0 0.0
        %367 = vmatprep.subr.mxu0 0.0
        %368 = vmatpush1.msra.mxu0 0.0
        %369 = vmatprep.subr.mxu0 %v309
        %370 = vmatpush1.msra.mxu0 %v307
        %371 = vmatprep.subr.mxu0 0.0
        %372 = vmatpush2.msra.mxu0 0.0
        %373 = vmatprep.subr.mxu0 0.0
        %374 = vmatpush2.msra.mxu0 0.0
        %375 = vmatprep.subr.mxu0 0.0
        %376 = vmatpush2.msra.mxu0 0.0
        %377 = vmatprep.subr.mxu0 0.0
        %378 = vmatpush2.msra.mxu0 0.0
        %379 = vmatprep.subr.mxu0 0.0
        %380 = vmatpush2.msra.mxu0 0.0
        %381 = vmatprep.subr.mxu0 0.0
        %382 = vmatpush2.msra.mxu0 0.0
        %383 = vmatprep.subr.mxu0 0.0
        %384 = vmatpush2.msra.mxu0 0.0
        %385 = vmatprep.subr.mxu0 0.0
        %386 = vmatpush2.msra.mxu0 0.0
        %387 = vmatprep.subr.mxu0 0.0
        %388 = vmatpush2.msra.mxu0 0.0
        %389 = vmatprep.subr.mxu0 0.0
        %390 = vmatpush2.msra.mxu0 0.0
        %391 = vmatprep.subr.mxu0 0.0
        %392 = vmatpush2.msra.mxu0 0.0
        %393 = vmatprep.subr.mxu0 0.0
        %394 = vmatpush2.msra.mxu0 0.0
        %395 = vmatprep.subr.mxu0 0.0
        %396 = vmatpush2.msra.mxu0 0.0
        %397 = vmatprep.subr.mxu0 0.0
        %398 = vmatpush2.msra.mxu0 0.0
        %399 = vmatprep.subr.mxu0 0.0
        %400 = vmatpush2.msra.mxu0 0.0
        %401 = vmatprep.subr.mxu0 0.0
        %402 = vmatpush2.msra.mxu0 0.0
        %403 = vmatprep.mubr.f32.mxu0 0.0
        %404 = vmatmul.mubr.f32.gmra.mxu0 %v301
        %v405 = vpop.f32.mrf.mxu0
        %v406 = vadd.f32 %v276, %v405
        %v407 = vpop.f32.mrf.mxu0
        %v408 = vadd.f32 %v276, %v407
        %409 = vmatprep.mubr.f32.mxu0 0.0
        %410 = vmatmul.mubr.f32.gmra.mxu0 %v304
        %v411 = vpop.f32.mrf.mxu0
        %v412 = vadd.f32 %v281, %v411
        %v413 = vpop.f32.mrf.mxu0
        %v414 = vadd.f32 %v281, %v413
        %415 = vdwg.mxu0
        %416 = vmatprep.subr.mxu0 0.0
        %417 = vmatpush1.msra.mxu0 0.0
        %418 = vmatprep.subr.mxu0 0.0
        %419 = vmatpush1.msra.mxu0 0.0
        %420 = vmatprep.subr.mxu0 0.0
        %421 = vmatpush1.msra.mxu0 0.0
        %422 = vmatprep.subr.mxu0 0.0
        %423 = vmatpush1.msra.mxu0 0.0
        %424 = vmatprep.subr.mxu0 0.0
        %425 = vmatpush1.msra.mxu0 0.0
        %426 = vmatprep.subr.mxu0 0.0
        %427 = vmatpush1.msra.mxu0 0.0
        %428 = vmatprep.subr.mxu0 0.0
        %429 = vmatpush1.msra.mxu0 0.0
        %430 = vmatprep.subr.mxu0 0.0
        %431 = vmatpush1.msra.mxu0 0.0
        %432 = vmatprep.subr.mxu0 0.0
        %433 = vmatpush1.msra.mxu0 0.0
        %434 = vmatprep.subr.mxu0 0.0
        %435 = vmatpush1.msra.mxu0 0.0
        %436 = vmatprep.subr.mxu0 0.0
        %437 = vmatpush1.msra.mxu0 0.0
        %438 = vmatprep.subr.mxu0 0.0
        %439 = vmatpush1.msra.mxu0 0.0
        %440 = vmatprep.subr.mxu0 0.0
        %441 = vmatpush1.msra.mxu0 0.0
        %442 = vmatprep.subr.mxu0 0.0
        %443 = vmatpush1.msra.mxu0 0.0
        %444 = vmatprep.subr.mxu0 0.0
        %445 = vmatpush1.msra.mxu0 0.0
        %446 = vmatprep.subr.mxu0 %v313
        %447 = vmatpush1.msra.mxu0 %v311
        %448 = vmatprep.subr.mxu0 0.0
        %449 = vmatpush2.msra.mxu0 0.0
        %450 = vmatprep.subr.mxu0 0.0
        %451 = vmatpush2.msra.mxu0 0.0
        %452 = vmatprep.subr.mxu0 0.0
        %453 = vmatpush2.msra.mxu0 0.0
        %454 = vmatprep.subr.mxu0 0.0
        %455 = vmatpush2.msra.mxu0 0.0
        %456 = vmatprep.subr.mxu0 0.0
        %457 = vmatpush2.msra.mxu0 0.0
        %458 = vmatprep.subr.mxu0 0.0
        %459 = vmatpush2.msra.mxu0 0.0
        %460 = vmatprep.subr.mxu0 0.0
        %461 = vmatpush2.msra.mxu0 0.0
        %462 = vmatprep.subr.mxu0 0.0
        %463 = vmatpush2.msra.mxu0 0.0
        %464 = vmatprep.subr.mxu0 0.0
        %465 = vmatpush2.msra.mxu0 0.0
        %466 = vmatprep.subr.mxu0 0.0
        %467 = vmatpush2.msra.mxu0 0.0
        %468 = vmatprep.subr.mxu0 0.0
        %469 = vmatpush2.msra.mxu0 0.0
        %470 = vmatprep.subr.mxu0 0.0
        %471 = vmatpush2.msra.mxu0 0.0
        %472 = vmatprep.subr.mxu0 0.0
        %473 = vmatpush2.msra.mxu0 0.0
        %474 = vmatprep.subr.mxu0 0.0
        %475 = vmatpush2.msra.mxu0 0.0
        %476 = vmatprep.subr.mxu0 0.0
        %477 = vmatpush2.msra.mxu0 0.0
        %478 = vmatprep.subr.mxu0 0.0
        %479 = vmatpush2.msra.mxu0 0.0
        %480 = vmatprep.mubr.f32.mxu0 0.0
        %481 = vmatmul.mubr.f32.gmra.mxu0 %v301
        %v482 = vpop.f32.mrf.mxu0
        %v483 = vadd.f32 %v276, %v482
        %v484 = vpop.f32.mrf.mxu0
        %v485 = vadd.f32 %v276, %v484
        %486 = vmatprep.mubr.f32.mxu0 0.0
        %487 = vmatmul.mubr.f32.gmra.mxu0 %v304
        %v488 = vpop.f32.mrf.mxu0
        %v489 = vadd.f32 %v281, %v488
        %v490 = vpop.f32.mrf.mxu0
        %v491 = vadd.f32 %v281, %v490
        %492 = vdwg.mxu0
        %493 = vmatprep.subr.mxu0 0.0
        %494 = vmatpush1.msra.mxu0 0.0
        %495 = vmatprep.subr.mxu0 0.0
        %496 = vmatpush1.msra.mxu0 0.0
        %497 = vmatprep.subr.mxu0 0.0
        %498 = vmatpush1.msra.mxu0 0.0
        %499 = vmatprep.subr.mxu0 0.0
        %500 = vmatpush1.msra.mxu0 0.0
        %501 = vmatprep.subr.mxu0 0.0
        %502 = vmatpush1.msra.mxu0 0.0
        %503 = vmatprep.subr.mxu0 0.0
        %504 = vmatpush1.msra.mxu0 0.0
        %505 = vmatprep.subr.mxu0 0.0
        %506 = vmatpush1.msra.mxu0 0.0
        %507 = vmatprep.subr.mxu0 0.0
        %508 = vmatpush1.msra.mxu0 0.0
        %509 = vmatprep.subr.mxu0 0.0
        %510 = vmatpush1.msra.mxu0 0.0
        %511 = vmatprep.subr.mxu0 0.0
        %512 = vmatpush1.msra.mxu0 0.0
        %513 = vmatprep.subr.mxu0 0.0
        %514 = vmatpush1.msra.mxu0 0.0
        %515 = vmatprep.subr.mxu0 0.0
        %516 = vmatpush1.msra.mxu0 0.0
        %517 = vmatprep.subr.mxu0 0.0
        %518 = vmatpush1.msra.mxu0 0.0
        %519 = vmatprep.subr.mxu0 0.0
        %520 = vmatpush1.msra.mxu0 0.0
        %521 = vmatprep.subr.mxu0 0.0
        %522 = vmatpush1.msra.mxu0 0.0
        %523 = vmatprep.subr.mxu0 %v317
        %524 = vmatpush1.msra.mxu0 %v315
        %525 = vmatprep.subr.mxu0 0.0
        %526 = vmatpush2.msra.mxu0 0.0
        %527 = vmatprep.subr.mxu0 0.0
        %528 = vmatpush2.msra.mxu0 0.0
        %529 = vmatprep.subr.mxu0 0.0
        %530 = vmatpush2.msra.mxu0 0.0
        %531 = vmatprep.subr.mxu0 0.0
        %532 = vmatpush2.msra.mxu0 0.0
        %533 = vmatprep.subr.mxu0 0.0
        %534 = vmatpush2.msra.mxu0 0.0
        %535 = vmatprep.subr.mxu0 0.0
        %536 = vmatpush2.msra.mxu0 0.0
        %537 = vmatprep.subr.mxu0 0.0
        %538 = vmatpush2.msra.mxu0 0.0
        %539 = vmatprep.subr.mxu0 0.0
        %540 = vmatpush2.msra.mxu0 0.0
        %541 = vmatprep.subr.mxu0 0.0
        %542 = vmatpush2.msra.mxu0 0.0
        %543 = vmatprep.subr.mxu0 0.0
        %544 = vmatpush2.msra.mxu0 0.0
        %545 = vmatprep.subr.mxu0 0.0
        %546 = vmatpush2.msra.mxu0 0.0
        %547 = vmatprep.subr.mxu0 0.0
        %548 = vmatpush2.msra.mxu0 0.0
        %549 = vmatprep.subr.mxu0 0.0
        %550 = vmatpush2.msra.mxu0 0.0
        %551 = vmatprep.subr.mxu0 0.0
        %552 = vmatpush2.msra.mxu0 0.0
        %553 = vmatprep.subr.mxu0 0.0
        %554 = vmatpush2.msra.mxu0 0.0
        %555 = vmatprep.subr.mxu0 0.0
        %556 = vmatpush2.msra.mxu0 0.0
        %557 = vmatprep.mubr.f32.mxu0 0.0
        %558 = vmatmul.mubr.f32.gmra.mxu0 %v301
        %v559 = vpop.f32.mrf.mxu0
        %v560 = vadd.f32 %v276, %v559
        %v561 = vpop.f32.mrf.mxu0
        %v562 = vadd.f32 %v276, %v561
        %563 = vmatprep.mubr.f32.mxu0 0.0
        %564 = vmatmul.mubr.f32.gmra.mxu0 %v304
        %v565 = vpop.f32.mrf.mxu0
        %v566 = vadd.f32 %v281, %v565
        %v567 = vpop.f32.mrf.mxu0
        %v568 = vadd.f32 %v281, %v567
        %569 = vdwg.mxu0
        %570 = vmatprep.subr.mxu0 0.0
        %571 = vmatpush1.msra.mxu0 0.0
        %572 = vmatprep.subr.mxu0 0.0
        %573 = vmatpush1.msra.mxu0 0.0
        %574 = vmatprep.subr.mxu0 0.0
        %575 = vmatpush1.msra.mxu0 0.0
        %576 = vmatprep.subr.mxu0 0.0
        %577 = vmatpush1.msra.mxu0 0.0
        %578 = vmatprep.subr.mxu0 0.0
        %579 = vmatpush1.msra.mxu0 0.0
        %580 = vmatprep.subr.mxu0 0.0
        %581 = vmatpush1.msra.mxu0 0.0
        %582 = vmatprep.subr.mxu0 0.0
        %583 = vmatpush1.msra.mxu0 0.0
        %584 = vmatprep.subr.mxu0 0.0
        %585 = vmatpush1.msra.mxu0 0.0
        %586 = vmatprep.subr.mxu0 0.0
        %587 = vmatpush1.msra.mxu0 0.0
        %588 = vmatprep.subr.mxu0 0.0
        %589 = vmatpush1.msra.mxu0 0.0
        %590 = vmatprep.subr.mxu0 0.0
        %591 = vmatpush1.msra.mxu0 0.0
        %592 = vmatprep.subr.mxu0 0.0
        %593 = vmatpush1.msra.mxu0 0.0
        %594 = vmatprep.subr.mxu0 0.0
        %595 = vmatpush1.msra.mxu0 0.0
        %596 = vmatprep.subr.mxu0 0.0
        %597 = vmatpush1.msra.mxu0 0.0
        %598 = vmatprep.subr.mxu0 0.0
        %599 = vmatpush1.msra.mxu0 0.0
        %600 = vmatprep.subr.mxu0 %v321
        %601 = vmatpush1.msra.mxu0 %v319
        %602 = vmatprep.subr.mxu0 0.0
        %603 = vmatpush2.msra.mxu0 0.0
        %604 = vmatprep.subr.mxu0 0.0
        %605 = vmatpush2.msra.mxu0 0.0
        %606 = vmatprep.subr.mxu0 0.0
        %607 = vmatpush2.msra.mxu0 0.0
        %608 = vmatprep.subr.mxu0 0.0
        %609 = vmatpush2.msra.mxu0 0.0
        %610 = vmatprep.subr.mxu0 0.0
        %611 = vmatpush2.msra.mxu0 0.0
        %612 = vmatprep.subr.mxu0 0.0
        %613 = vmatpush2.msra.mxu0 0.0
        %614 = vmatprep.subr.mxu0 0.0
        %615 = vmatpush2.msra.mxu0 0.0
        %616 = vmatprep.subr.mxu0 0.0
        %617 = vmatpush2.msra.mxu0 0.0
        %618 = vmatprep.subr.mxu0 0.0
        %619 = vmatpush2.msra.mxu0 0.0
        %620 = vmatprep.subr.mxu0 0.0
        %621 = vmatpush2.msra.mxu0 0.0
        %622 = vmatprep.subr.mxu0 0.0
        %623 = vmatpush2.msra.mxu0 0.0
        %624 = vmatprep.subr.mxu0 0.0
        %625 = vmatpush2.msra.mxu0 0.0
        %626 = vmatprep.subr.mxu0 0.0
        %627 = vmatpush2.msra.mxu0 0.0
        %628 = vmatprep.subr.mxu0 0.0
        %629 = vmatpush2.msra.mxu0 0.0
        %630 = vmatprep.subr.mxu0 0.0
        %631 = vmatpush2.msra.mxu0 0.0
        %632 = vmatprep.subr.mxu0 0.0
        %633 = vmatpush2.msra.mxu0 0.0
        %634 = vmatprep.mubr.f32.mxu0 0.0
        %635 = vmatmul.mubr.f32.gmra.mxu0 %v301
        %v636 = vpop.f32.mrf.mxu0
        %v637 = vadd.f32 %v276, %v636
        %v638 = vpop.f32.mrf.mxu0
        %v639 = vadd.f32 %v276, %v638
        %640 = vmatprep.mubr.f32.mxu0 0.0
        %641 = vmatmul.mubr.f32.gmra.mxu0 %v304
        %v642 = vpop.f32.mrf.mxu0
        %v643 = vadd.f32 %v281, %v642
        %v644 = vpop.f32.mrf.mxu0
        %v645 = vadd.f32 %v281, %v644
        %646 = vdwg.mxu0
        %647 = vmatprep.subr.mxu0 0.0
        %648 = vmatpush1.msra.mxu0 0.0
        %649 = vmatprep.subr.mxu0 0.0
        %650 = vmatpush1.msra.mxu0 0.0
        %651 = vmatprep.subr.mxu0 0.0
        %652 = vmatpush1.msra.mxu0 0.0
        %653 = vmatprep.subr.mxu0 0.0
        %654 = vmatpush1.msra.mxu0 0.0
        %655 = vmatprep.subr.mxu0 0.0
        %656 = vmatpush1.msra.mxu0 0.0
        %657 = vmatprep.subr.mxu0 0.0
        %658 = vmatpush1.msra.mxu0 0.0
        %659 = vmatprep.subr.mxu0 0.0
        %660 = vmatpush1.msra.mxu0 0.0
        %661 = vmatprep.subr.mxu0 0.0
        %662 = vmatpush1.msra.mxu0 0.0
        %663 = vmatprep.subr.mxu0 0.0
        %664 = vmatpush1.msra.mxu0 0.0
        %665 = vmatprep.subr.mxu0 0.0
        %666 = vmatpush1.msra.mxu0 0.0
        %667 = vmatprep.subr.mxu0 0.0
        %668 = vmatpush1.msra.mxu0 0.0
        %669 = vmatprep.subr.mxu0 0.0
        %670 = vmatpush1.msra.mxu0 0.0
        %671 = vmatprep.subr.mxu0 0.0
        %672 = vmatpush1.msra.mxu0 0.0
        %673 = vmatprep.subr.mxu0 0.0
        %674 = vmatpush1.msra.mxu0 0.0
        %675 = vmatprep.subr.mxu0 0.0
        %676 = vmatpush1.msra.mxu0 0.0
        %677 = vmatprep.subr.mxu0 %v325
        %678 = vmatpush1.msra.mxu0 %v323
        %679 = vmatprep.subr.mxu0 0.0
        %680 = vmatpush2.msra.mxu0 0.0
        %681 = vmatprep.subr.mxu0 0.0
        %682 = vmatpush2.msra.mxu0 0.0
        %683 = vmatprep.subr.mxu0 0.0
        %684 = vmatpush2.msra.mxu0 0.0
        %685 = vmatprep.subr.mxu0 0.0
        %686 = vmatpush2.msra.mxu0 0.0
        %687 = vmatprep.subr.mxu0 0.0
        %688 = vmatpush2.msra.mxu0 0.0
        %689 = vmatprep.subr.mxu0 0.0
        %690 = vmatpush2.msra.mxu0 0.0
        %691 = vmatprep.subr.mxu0 0.0
        %692 = vmatpush2.msra.mxu0 0.0
        %693 = vmatprep.subr.mxu0 0.0
        %694 = vmatpush2.msra.mxu0 0.0
        %695 = vmatprep.subr.mxu0 0.0
        %696 = vmatpush2.msra.mxu0 0.0
        %697 = vmatprep.subr.mxu0 0.0
        %698 = vmatpush2.msra.mxu0 0.0
        %699 = vmatprep.subr.mxu0 0.0
        %700 = vmatpush2.msra.mxu0 0.0
        %701 = vmatprep.subr.mxu0 0.0
        %702 = vmatpush2.msra.mxu0 0.0
        %703 = vmatprep.subr.mxu0 0.0
        %704 = vmatpush2.msra.mxu0 0.0
        %705 = vmatprep.subr.mxu0 0.0
        %706 = vmatpush2.msra.mxu0 0.0
        %707 = vmatprep.subr.mxu0 0.0
        %708 = vmatpush2.msra.mxu0 0.0
        %709 = vmatprep.subr.mxu0 0.0
        %710 = vmatpush2.msra.mxu0 0.0
        %711 = vmatprep.mubr.f32.mxu0 0.0
        %712 = vmatmul.mubr.f32.gmra.mxu0 %v301
        %v713 = vpop.f32.mrf.mxu0
        %v714 = vadd.f32 %v276, %v713
        %v715 = vpop.f32.mrf.mxu0
        %v716 = vadd.f32 %v276, %v715
        %717 = vmatprep.mubr.f32.mxu0 0.0
        %718 = vmatmul.mubr.f32.gmra.mxu0 %v304
        %v719 = vpop.f32.mrf.mxu0
        %v720 = vadd.f32 %v281, %v719
        %v721 = vpop.f32.mrf.mxu0
        %v722 = vadd.f32 %v281, %v721
        %723 = vdwg.mxu0
        %724 = vmatprep.subr.mxu0 0.0
        %725 = vmatpush1.msra.mxu0 0.0
        %726 = vmatprep.subr.mxu0 0.0
        %727 = vmatpush1.msra.mxu0 0.0
        %728 = vmatprep.subr.mxu0 0.0
        %729 = vmatpush1.msra.mxu0 0.0
        %730 = vmatprep.subr.mxu0 0.0
        %731 = vmatpush1.msra.mxu0 0.0
        %732 = vmatprep.subr.mxu0 0.0
        %733 = vmatpush1.msra.mxu0 0.0
        %734 = vmatprep.subr.mxu0 0.0
        %735 = vmatpush1.msra.mxu0 0.0
        %736 = vmatprep.subr.mxu0 0.0
        %737 = vmatpush1.msra.mxu0 0.0
        %738 = vmatprep.subr.mxu0 0.0
        %739 = vmatpush1.msra.mxu0 0.0
        %740 = vmatprep.subr.mxu0 0.0
        %741 = vmatpush1.msra.mxu0 0.0
        %742 = vmatprep.subr.mxu0 0.0
        %743 = vmatpush1.msra.mxu0 0.0
        %744 = vmatprep.subr.mxu0 0.0
        %745 = vmatpush1.msra.mxu0 0.0
        %746 = vmatprep.subr.mxu0 0.0
        %747 = vmatpush1.msra.mxu0 0.0
        %748 = vmatprep.subr.mxu0 0.0
        %749 = vmatpush1.msra.mxu0 0.0
        %750 = vmatprep.subr.mxu0 0.0
        %751 = vmatpush1.msra.mxu0 0.0
        %752 = vmatprep.subr.mxu0 0.0
        %753 = vmatpush1.msra.mxu0 0.0
        %754 = vmatprep.subr.mxu0 %v329
        %755 = vmatpush1.msra.mxu0 %v327
        %756 = vmatprep.subr.mxu0 0.0
        %757 = vmatpush2.msra.mxu0 0.0
        %758 = vmatprep.subr.mxu0 0.0
        %759 = vmatpush2.msra.mxu0 0.0
        %760 = vmatprep.subr.mxu0 0.0
        %761 = vmatpush2.msra.mxu0 0.0
        %762 = vmatprep.subr.mxu0 0.0
        %763 = vmatpush2.msra.mxu0 0.0
        %764 = vmatprep.subr.mxu0 0.0
        %765 = vmatpush2.msra.mxu0 0.0
        %766 = vmatprep.subr.mxu0 0.0
        %767 = vmatpush2.msra.mxu0 0.0
        %768 = vmatprep.subr.mxu0 0.0
        %769 = vmatpush2.msra.mxu0 0.0
        %770 = vmatprep.subr.mxu0 0.0
        %771 = vmatpush2.msra.mxu0 0.0
        %772 = vmatprep.subr.mxu0 0.0
        %773 = vmatpush2.msra.mxu0 0.0
        %774 = vmatprep.subr.mxu0 0.0
        %775 = vmatpush2.msra.mxu0 0.0
        %776 = vmatprep.subr.mxu0 0.0
        %777 = vmatpush2.msra.mxu0 0.0
        %778 = vmatprep.subr.mxu0 0.0
        %779 = vmatpush2.msra.mxu0 0.0
        %780 = vmatprep.subr.mxu0 0.0
        %781 = vmatpush2.msra.mxu0 0.0
        %782 = vmatprep.subr.mxu0 0.0
        %783 = vmatpush2.msra.mxu0 0.0
        %784 = vmatprep.subr.mxu0 0.0
        %785 = vmatpush2.msra.mxu0 0.0
        %786 = vmatprep.subr.mxu0 0.0
        %787 = vmatpush2.msra.mxu0 0.0
        %788 = vmatprep.mubr.f32.mxu0 0.0
        %789 = vmatmul.mubr.f32.gmra.mxu0 %v301
        %v790 = vpop.f32.mrf.mxu0
        %v791 = vadd.f32 %v276, %v790
        %v792 = vpop.f32.mrf.mxu0
        %v793 = vadd.f32 %v276, %v792
        %794 = vmatprep.mubr.f32.mxu0 0.0
        %795 = vmatmul.mubr.f32.gmra.mxu0 %v304
        %v796 = vpop.f32.mrf.mxu0
        %v797 = vadd.f32 %v281, %v796
        %v798 = vpop.f32.mrf.mxu0
        %v799 = vadd.f32 %v281, %v798
        %800 = vdwg.mxu0
        %801 = vmatprep.subr.mxu0 0.0
        %802 = vmatpush1.msra.mxu0 0.0
        %803 = vmatprep.subr.mxu0 0.0
        %804 = vmatpush1.msra.mxu0 0.0
        %805 = vmatprep.subr.mxu0 0.0
        %806 = vmatpush1.msra.mxu0 0.0
        %807 = vmatprep.subr.mxu0 0.0
        %808 = vmatpush1.msra.mxu0 0.0
        %809 = vmatprep.subr.mxu0 0.0
        %810 = vmatpush1.msra.mxu0 0.0
        %811 = vmatprep.subr.mxu0 0.0
        %812 = vmatpush1.msra.mxu0 0.0
        %813 = vmatprep.subr.mxu0 0.0
        %814 = vmatpush1.msra.mxu0 0.0
        %815 = vmatprep.subr.mxu0 0.0
        %816 = vmatpush1.msra.mxu0 0.0
        %817 = vmatprep.subr.mxu0 0.0
        %818 = vmatpush1.msra.mxu0 0.0
        %819 = vmatprep.subr.mxu0 0.0
        %820 = vmatpush1.msra.mxu0 0.0
        %821 = vmatprep.subr.mxu0 0.0
        %822 = vmatpush1.msra.mxu0 0.0
        %823 = vmatprep.subr.mxu0 0.0
        %824 = vmatpush1.msra.mxu0 0.0
        %825 = vmatprep.subr.mxu0 0.0
        %826 = vmatpush1.msra.mxu0 0.0
        %827 = vmatprep.subr.mxu0 0.0
        %828 = vmatpush1.msra.mxu0 0.0
        %829 = vmatprep.subr.mxu0 0.0
        %830 = vmatpush1.msra.mxu0 0.0
        %831 = vmatprep.subr.mxu0 %v333
        %832 = vmatpush1.msra.mxu0 %v331
        %833 = vmatprep.subr.mxu0 0.0
        %834 = vmatpush2.msra.mxu0 0.0
        %835 = vmatprep.subr.mxu0 0.0
        %836 = vmatpush2.msra.mxu0 0.0
        %837 = vmatprep.subr.mxu0 0.0
        %838 = vmatpush2.msra.mxu0 0.0
        %839 = vmatprep.subr.mxu0 0.0
        %840 = vmatpush2.msra.mxu0 0.0
        %841 = vmatprep.subr.mxu0 0.0
        %842 = vmatpush2.msra.mxu0 0.0
        %843 = vmatprep.subr.mxu0 0.0
        %844 = vmatpush2.msra.mxu0 0.0
        %845 = vmatprep.subr.mxu0 0.0
        %846 = vmatpush2.msra.mxu0 0.0
        %847 = vmatprep.subr.mxu0 0.0
        %848 = vmatpush2.msra.mxu0 0.0
        %849 = vmatprep.subr.mxu0 0.0
        %850 = vmatpush2.msra.mxu0 0.0
        %851 = vmatprep.subr.mxu0 0.0
        %852 = vmatpush2.msra.mxu0 0.0
        %853 = vmatprep.subr.mxu0 0.0
        %854 = vmatpush2.msra.mxu0 0.0
        %855 = vmatprep.subr.mxu0 0.0
        %856 = vmatpush2.msra.mxu0 0.0
        %857 = vmatprep.subr.mxu0 0.0
        %858 = vmatpush2.msra.mxu0 0.0
        %859 = vmatprep.subr.mxu0 0.0
        %860 = vmatpush2.msra.mxu0 0.0
        %861 = vmatprep.subr.mxu0 0.0
        %862 = vmatpush2.msra.mxu0 0.0
        %863 = vmatprep.subr.mxu0 0.0
        %864 = vmatpush2.msra.mxu0 0.0
        %865 = vmatprep.mubr.f32.mxu0 0.0
        %866 = vmatmul.mubr.f32.gmra.mxu0 %v301
        %v867 = vpop.f32.mrf.mxu0
        %v868 = vadd.f32 %v276, %v867
        %v869 = vpop.f32.mrf.mxu0
        %v870 = vadd.f32 %v276, %v869
        %871 = vmatprep.mubr.f32.mxu0 0.0
        %872 = vmatmul.mubr.f32.gmra.mxu0 %v304
        %v873 = vpop.f32.mrf.mxu0
        %v874 = vadd.f32 %v281, %v873
        %v875 = vpop.f32.mrf.mxu0
        %v876 = vadd.f32 %v281, %v875
        %877 = vdwg.mxu0
        %878 = vmatprep.subr.mxu0 0.0
        %879 = vmatpush1.msra.mxu0 0.0
        %880 = vmatprep.subr.mxu0 0.0
        %881 = vmatpush1.msra.mxu0 0.0
        %882 = vmatprep.subr.mxu0 0.0
        %883 = vmatpush1.msra.mxu0 0.0
        %884 = vmatprep.subr.mxu0 0.0
        %885 = vmatpush1.msra.mxu0 0.0
        %886 = vmatprep.subr.mxu0 0.0
        %887 = vmatpush1.msra.mxu0 0.0
        %888 = vmatprep.subr.mxu0 0.0
        %889 = vmatpush1.msra.mxu0 0.0
        %890 = vmatprep.subr.mxu0 0.0
        %891 = vmatpush1.msra.mxu0 0.0
        %892 = vmatprep.subr.mxu0 0.0
        %893 = vmatpush1.msra.mxu0 0.0
        %894 = vmatprep.subr.mxu0 0.0
        %895 = vmatpush1.msra.mxu0 0.0
        %896 = vmatprep.subr.mxu0 0.0
        %897 = vmatpush1.msra.mxu0 0.0
        %898 = vmatprep.subr.mxu0 0.0
        %899 = vmatpush1.msra.mxu0 0.0
        %900 = vmatprep.subr.mxu0 0.0
        %901 = vmatpush1.msra.mxu0 0.0
        %902 = vmatprep.subr.mxu0 0.0
        %903 = vmatpush1.msra.mxu0 0.0
        %904 = vmatprep.subr.mxu0 0.0
        %905 = vmatpush1.msra.mxu0 0.0
        %906 = vmatprep.subr.mxu0 0.0
        %907 = vmatpush1.msra.mxu0 0.0
        %908 = vmatprep.subr.mxu0 %v337
        %909 = vmatpush1.msra.mxu0 %v335
        %910 = vmatprep.subr.mxu0 0.0
        %911 = vmatpush2.msra.mxu0 0.0
        %912 = vmatprep.subr.mxu0 0.0
        %913 = vmatpush2.msra.mxu0 0.0
        %914 = vmatprep.subr.mxu0 0.0
        %915 = vmatpush2.msra.mxu0 0.0
        %916 = vmatprep.subr.mxu0 0.0
        %917 = vmatpush2.msra.mxu0 0.0
        %918 = vmatprep.subr.mxu0 0.0
        %919 = vmatpush2.msra.mxu0 0.0
        %920 = vmatprep.subr.mxu0 0.0
        %921 = vmatpush2.msra.mxu0 0.0
        %922 = vmatprep.subr.mxu0 0.0
        %923 = vmatpush2.msra.mxu0 0.0
        %924 = vmatprep.subr.mxu0 0.0
        %925 = vmatpush2.msra.mxu0 0.0
        %926 = vmatprep.subr.mxu0 0.0
        %927 = vmatpush2.msra.mxu0 0.0
        %928 = vmatprep.subr.mxu0 0.0
        %929 = vmatpush2.msra.mxu0 0.0
        %930 = vmatprep.subr.mxu0 0.0
        %931 = vmatpush2.msra.mxu0 0.0
        %932 = vmatprep.subr.mxu0 0.0
        %933 = vmatpush2.msra.mxu0 0.0
        %934 = vmatprep.subr.mxu0 0.0
        %935 = vmatpush2.msra.mxu0 0.0
        %936 = vmatprep.subr.mxu0 0.0
        %937 = vmatpush2.msra.mxu0 0.0
        %938 = vmatprep.subr.mxu0 0.0
        %939 = vmatpush2.msra.mxu0 0.0
        %940 = vmatprep.subr.mxu0 0.0
        %941 = vmatpush2.msra.mxu0 0.0
        %942 = vmatprep.mubr.f32.mxu0 0.0
        %943 = vmatmul.mubr.f32.gmra.mxu0 %v301
        %v944 = vpop.f32.mrf.mxu0
        %v945 = vadd.f32 %v276, %v944
        %v946 = vpop.f32.mrf.mxu0
        %v947 = vadd.f32 %v276, %v946
        %948 = vmatprep.mubr.f32.mxu0 0.0
        %949 = vmatmul.mubr.f32.gmra.mxu0 %v304
        %v950 = vpop.f32.mrf.mxu0
        %v951 = vadd.f32 %v281, %v950
        %v952 = vpop.f32.mrf.mxu0
        %v953 = vadd.f32 %v281, %v952
        %954 = vdwg.mxu0
        %v955 = vld [vmem:[%s3] sm:$0xff]
        %v956 = vld [vmem:[%s3 + $0x8] sm:$0xff]
        %v957 = vld [vmem:[%s4] sm:$0xff]
        %v958 = vld [vmem:[%s4 + $0x8] sm:$0xff]
        %960 = vset.pattern.permute.xlu0 0
        %961 = vperm.xlu0 %960, %v957
        %v962 = vpop.permute.xlu0 %961
        %965 = vset.pattern.permute.xlu0 0
        %966 = vperm.xlu0 %965, %v958
        %v967 = vpop.permute.xlu0 %966
        %v970 = vsel %vm299, %v955, 0
        %v973 = vsel %vm299, %v956, 0
        %975 = vmatprep.subr.mxu0 0.0
        %976 = vmatpush1.msra.mxu0 0.0
        %977 = vmatprep.subr.mxu0 0.0
        %978 = vmatpush1.msra.mxu0 0.0
        %979 = vmatprep.subr.mxu0 0.0
        %980 = vmatpush1.msra.mxu0 0.0
        %981 = vmatprep.subr.mxu0 0.0
        %982 = vmatpush1.msra.mxu0 0.0
        %983 = vmatprep.subr.mxu0 0.0
        %984 = vmatpush1.msra.mxu0 0.0
        %985 = vmatprep.subr.mxu0 0.0
        %986 = vmatpush1.msra.mxu0 0.0
        %987 = vmatprep.subr.mxu0 0.0
        %988 = vmatpush1.msra.mxu0 0.0
        %989 = vmatprep.subr.mxu0 0.0
        %990 = vmatpush1.msra.mxu0 0.0
        %991 = vmatprep.subr.mxu0 0.0
        %992 = vmatpush1.msra.mxu0 0.0
        %993 = vmatprep.subr.mxu0 0.0
        %994 = vmatpush1.msra.mxu0 0.0
        %995 = vmatprep.subr.mxu0 0.0
        %996 = vmatpush1.msra.mxu0 0.0
        %997 = vmatprep.subr.mxu0 0.0
        %998 = vmatpush1.msra.mxu0 0.0
        %999 = vmatprep.subr.mxu0 0.0
        %1000 = vmatpush1.msra.mxu0 0.0
        %1001 = vmatprep.subr.mxu0 0.0
        %1002 = vmatpush1.msra.mxu0 0.0
        %1003 = vmatprep.subr.mxu0 0.0
        %1004 = vmatpush1.msra.mxu0 0.0
        %1005 = vmatprep.subr.mxu0 %v309
        %1006 = vmatpush1.msra.mxu0 %v307
        %1007 = vmatprep.subr.mxu0 0.0
        %1008 = vmatpush2.msra.mxu0 0.0
        %1009 = vmatprep.subr.mxu0 0.0
        %1010 = vmatpush2.msra.mxu0 0.0
        %1011 = vmatprep.subr.mxu0 0.0
        %1012 = vmatpush2.msra.mxu0 0.0
        %1013 = vmatprep.subr.mxu0 0.0
        %1014 = vmatpush2.msra.mxu0 0.0
        %1015 = vmatprep.subr.mxu0 0.0
        %1016 = vmatpush2.msra.mxu0 0.0
        %1017 = vmatprep.subr.mxu0 0.0
        %1018 = vmatpush2.msra.mxu0 0.0
        %1019 = vmatprep.subr.mxu0 0.0
        %1020 = vmatpush2.msra.mxu0 0.0
        %1021 = vmatprep.subr.mxu0 0.0
        %1022 = vmatpush2.msra.mxu0 0.0
        %1023 = vmatprep.subr.mxu0 0.0
        %1024 = vmatpush2.msra.mxu0 0.0
        %1025 = vmatprep.subr.mxu0 0.0
        %1026 = vmatpush2.msra.mxu0 0.0
        %1027 = vmatprep.subr.mxu0 0.0
        %1028 = vmatpush2.msra.mxu0 0.0
        %1029 = vmatprep.subr.mxu0 0.0
        %1030 = vmatpush2.msra.mxu0 0.0
        %1031 = vmatprep.subr.mxu0 0.0
        %1032 = vmatpush2.msra.mxu0 0.0
        %1033 = vmatprep.subr.mxu0 0.0
        %1034 = vmatpush2.msra.mxu0 0.0
        %1035 = vmatprep.subr.mxu0 0.0
        %1036 = vmatpush2.msra.mxu0 0.0
        %1037 = vmatprep.subr.mxu0 0.0
        %1038 = vmatpush2.msra.mxu0 0.0
        %1039 = vmatprep.mubr.f32.mxu0 0.0
        %1040 = vmatmul.mubr.f32.gmra.mxu0 %v970
        %v1041 = vpop.f32.mrf.mxu0
        %v1042 = vadd.f32 %v962, %v1041
        %v1043 = vpop.f32.mrf.mxu0
        %v1044 = vadd.f32 %v962, %v1043
        %1045 = vmatprep.mubr.f32.mxu0 0.0
        %1046 = vmatmul.mubr.f32.gmra.mxu0 %v973
        %v1047 = vpop.f32.mrf.mxu0
        %v1048 = vadd.f32 %v967, %v1047
        %v1049 = vpop.f32.mrf.mxu0
        %v1050 = vadd.f32 %v967, %v1049
        %1051 = vdwg.mxu0
        %1052 = vmatprep.subr.mxu0 0.0
        %1053 = vmatpush1.msra.mxu0 0.0
        %1054 = vmatprep.subr.mxu0 0.0
        %1055 = vmatpush1.msra.mxu0 0.0
        %1056 = vmatprep.subr.mxu0 0.0
        %1057 = vmatpush1.msra.mxu0 0.0
        %1058 = vmatprep.subr.mxu0 0.0
        %1059 = vmatpush1.msra.mxu0 0.0
        %1060 = vmatprep.subr.mxu0 0.0
        %1061 = vmatpush1.msra.mxu0 0.0
        %1062 = vmatprep.subr.mxu0 0.0
        %1063 = vmatpush1.msra.mxu0 0.0
        %1064 = vmatprep.subr.mxu0 0.0
        %1065 = vmatpush1.msra.mxu0 0.0
        %1066 = vmatprep.subr.mxu0 0.0
        %1067 = vmatpush1.msra.mxu0 0.0
        %1068 = vmatprep.subr.mxu0 0.0
        %1069 = vmatpush1.msra.mxu0 0.0
        %1070 = vmatprep.subr.mxu0 0.0
        %1071 = vmatpush1.msra.mxu0 0.0
        %1072 = vmatprep.subr.mxu0 0.0
        %1073 = vmatpush1.msra.mxu0 0.0
        %1074 = vmatprep.subr.mxu0 0.0
        %1075 = vmatpush1.msra.mxu0 0.0
        %1076 = vmatprep.subr.mxu0 0.0
        %1077 = vmatpush1.msra.mxu0 0.0
        %1078 = vmatprep.subr.mxu0 0.0
        %1079 = vmatpush1.msra.mxu0 0.0
        %1080 = vmatprep.subr.mxu0 0.0
        %1081 = vmatpush1.msra.mxu0 0.0
        %1082 = vmatprep.subr.mxu0 %v313
        %1083 = vmatpush1.msra.mxu0 %v311
        %1084 = vmatprep.subr.mxu0 0.0
        %1085 = vmatpush2.msra.mxu0 0.0
        %1086 = vmatprep.subr.mxu0 0.0
        %1087 = vmatpush2.msra.mxu0 0.0
        %1088 = vmatprep.subr.mxu0 0.0
        %1089 = vmatpush2.msra.mxu0 0.0
        %1090 = vmatprep.subr.mxu0 0.0
        %1091 = vmatpush2.msra.mxu0 0.0
        %1092 = vmatprep.subr.mxu0 0.0
        %1093 = vmatpush2.msra.mxu0 0.0
        %1094 = vmatprep.subr.mxu0 0.0
        %1095 = vmatpush2.msra.mxu0 0.0
        %1096 = vmatprep.subr.mxu0 0.0
        %1097 = vmatpush2.msra.mxu0 0.0
        %1098 = vmatprep.subr.mxu0 0.0
        %1099 = vmatpush2.msra.mxu0 0.0
        %1100 = vmatprep.subr.mxu0 0.0
        %1101 = vmatpush2.msra.mxu0 0.0
        %1102 = vmatprep.subr.mxu0 0.0
        %1103 = vmatpush2.msra.mxu0 0.0
        %1104 = vmatprep.subr.mxu0 0.0
        %1105 = vmatpush2.msra.mxu0 0.0
        %1106 = vmatprep.subr.mxu0 0.0
        %1107 = vmatpush2.msra.mxu0 0.0
        %1108 = vmatprep.subr.mxu0 0.0
        %1109 = vmatpush2.msra.mxu0 0.0
        %1110 = vmatprep.subr.mxu0 0.0
        %1111 = vmatpush2.msra.mxu0 0.0
        %1112 = vmatprep.subr.mxu0 0.0
        %1113 = vmatpush2.msra.mxu0 0.0
        %1114 = vmatprep.subr.mxu0 0.0
        %1115 = vmatpush2.msra.mxu0 0.0
        %1116 = vmatprep.mubr.f32.mxu0 0.0
        %1117 = vmatmul.mubr.f32.gmra.mxu0 %v970
        %v1118 = vpop.f32.mrf.mxu0
        %v1119 = vadd.f32 %v962, %v1118
        %v1120 = vpop.f32.mrf.mxu0
        %v1121 = vadd.f32 %v962, %v1120
        %1122 = vmatprep.mubr.f32.mxu0 0.0
        %1123 = vmatmul.mubr.f32.gmra.mxu0 %v973
        %v1124 = vpop.f32.mrf.mxu0
        %v1125 = vadd.f32 %v967, %v1124
        %v1126 = vpop.f32.mrf.mxu0
        %v1127 = vadd.f32 %v967, %v1126
        %1128 = vdwg.mxu0
        %1129 = vmatprep.subr.mxu0 0.0
        %1130 = vmatpush1.msra.mxu0 0.0
        %1131 = vmatprep.subr.mxu0 0.0
        %1132 = vmatpush1.msra.mxu0 0.0
        %1133 = vmatprep.subr.mxu0 0.0
        %1134 = vmatpush1.msra.mxu0 0.0
        %1135 = vmatprep.subr.mxu0 0.0
        %1136 = vmatpush1.msra.mxu0 0.0
        %1137 = vmatprep.subr.mxu0 0.0
        %1138 = vmatpush1.msra.mxu0 0.0
        %1139 = vmatprep.subr.mxu0 0.0
        %1140 = vmatpush1.msra.mxu0 0.0
        %1141 = vmatprep.subr.mxu0 0.0
        %1142 = vmatpush1.msra.mxu0 0.0
        %1143 = vmatprep.subr.mxu0 0.0
        %1144 = vmatpush1.msra.mxu0 0.0
        %1145 = vmatprep.subr.mxu0 0.0
        %1146 = vmatpush1.msra.mxu0 0.0
        %1147 = vmatprep.subr.mxu0 0.0
        %1148 = vmatpush1.msra.mxu0 0.0
        %1149 = vmatprep.subr.mxu0 0.0
        %1150 = vmatpush1.msra.mxu0 0.0
        %1151 = vmatprep.subr.mxu0 0.0
        %1152 = vmatpush1.msra.mxu0 0.0
        %1153 = vmatprep.subr.mxu0 0.0
        %1154 = vmatpush1.msra.mxu0 0.0
        %1155 = vmatprep.subr.mxu0 0.0
        %1156 = vmatpush1.msra.mxu0 0.0
        %1157 = vmatprep.subr.mxu0 0.0
        %1158 = vmatpush1.msra.mxu0 0.0
        %1159 = vmatprep.subr.mxu0 %v317
        %1160 = vmatpush1.msra.mxu0 %v315
        %1161 = vmatprep.subr.mxu0 0.0
        %1162 = vmatpush2.msra.mxu0 0.0
        %1163 = vmatprep.subr.mxu0 0.0
        %1164 = vmatpush2.msra.mxu0 0.0
        %1165 = vmatprep.subr.mxu0 0.0
        %1166 = vmatpush2.msra.mxu0 0.0
        %1167 = vmatprep.subr.mxu0 0.0
        %1168 = vmatpush2.msra.mxu0 0.0
        %1169 = vmatprep.subr.mxu0 0.0
        %1170 = vmatpush2.msra.mxu0 0.0
        %1171 = vmatprep.subr.mxu0 0.0
        %1172 = vmatpush2.msra.mxu0 0.0
        %1173 = vmatprep.subr.mxu0 0.0
        %1174 = vmatpush2.msra.mxu0 0.0
        %1175 = vmatprep.subr.mxu0 0.0
        %1176 = vmatpush2.msra.mxu0 0.0
        %1177 = vmatprep.subr.mxu0 0.0
        %1178 = vmatpush2.msra.mxu0 0.0
        %1179 = vmatprep.subr.mxu0 0.0
        %1180 = vmatpush2.msra.mxu0 0.0
        %1181 = vmatprep.subr.mxu0 0.0
        %1182 = vmatpush2.msra.mxu0 0.0
        %1183 = vmatprep.subr.mxu0 0.0
        %1184 = vmatpush2.msra.mxu0 0.0
        %1185 = vmatprep.subr.mxu0 0.0
        %1186 = vmatpush2.msra.mxu0 0.0
        %1187 = vmatprep.subr.mxu0 0.0
        %1188 = vmatpush2.msra.mxu0 0.0
        %1189 = vmatprep.subr.mxu0 0.0
        %1190 = vmatpush2.msra.mxu0 0.0
        %1191 = vmatprep.subr.mxu0 0.0
        %1192 = vmatpush2.msra.mxu0 0.0
        %1193 = vmatprep.mubr.f32.mxu0 0.0
        %1194 = vmatmul.mubr.f32.gmra.mxu0 %v970
        %v1195 = vpop.f32.mrf.mxu0
        %v1196 = vadd.f32 %v962, %v1195
        %v1197 = vpop.f32.mrf.mxu0
        %v1198 = vadd.f32 %v962, %v1197
        %1199 = vmatprep.mubr.f32.mxu0 0.0
        %1200 = vmatmul.mubr.f32.gmra.mxu0 %v973
        %v1201 = vpop.f32.mrf.mxu0
        %v1202 = vadd.f32 %v967, %v1201
        %v1203 = vpop.f32.mrf.mxu0
        %v1204 = vadd.f32 %v967, %v1203
        %1205 = vdwg.mxu0
        %1206 = vmatprep.subr.mxu0 0.0
        %1207 = vmatpush1.msra.mxu0 0.0
        %1208 = vmatprep.subr.mxu0 0.0
        %1209 = vmatpush1.msra.mxu0 0.0
        %1210 = vmatprep.subr.mxu0 0.0
        %1211 = vmatpush1.msra.mxu0 0.0
        %1212 = vmatprep.subr.mxu0 0.0
        %1213 = vmatpush1.msra.mxu0 0.0
        %1214 = vmatprep.subr.mxu0 0.0
        %1215 = vmatpush1.msra.mxu0 0.0
        %1216 = vmatprep.subr.mxu0 0.0
        %1217 = vmatpush1.msra.mxu0 0.0
        %1218 = vmatprep.subr.mxu0 0.0
        %1219 = vmatpush1.msra.mxu0 0.0
        %1220 = vmatprep.subr.mxu0 0.0
        %1221 = vmatpush1.msra.mxu0 0.0
        %1222 = vmatprep.subr.mxu0 0.0
        %1223 = vmatpush1.msra.mxu0 0.0
        %1224 = vmatprep.subr.mxu0 0.0
        %1225 = vmatpush1.msra.mxu0 0.0
        %1226 = vmatprep.subr.mxu0 0.0
        %1227 = vmatpush1.msra.mxu0 0.0
        %1228 = vmatprep.subr.mxu0 0.0
        %1229 = vmatpush1.msra.mxu0 0.0
        %1230 = vmatprep.subr.mxu0 0.0
        %1231 = vmatpush1.msra.mxu0 0.0
        %1232 = vmatprep.subr.mxu0 0.0
        %1233 = vmatpush1.msra.mxu0 0.0
        %1234 = vmatprep.subr.mxu0 0.0
        %1235 = vmatpush1.msra.mxu0 0.0
        %1236 = vmatprep.subr.mxu0 %v321
        %1237 = vmatpush1.msra.mxu0 %v319
        %1238 = vmatprep.subr.mxu0 0.0
        %1239 = vmatpush2.msra.mxu0 0.0
        %1240 = vmatprep.subr.mxu0 0.0
        %1241 = vmatpush2.msra.mxu0 0.0
        %1242 = vmatprep.subr.mxu0 0.0
        %1243 = vmatpush2.msra.mxu0 0.0
        %1244 = vmatprep.subr.mxu0 0.0
        %1245 = vmatpush2.msra.mxu0 0.0
        %1246 = vmatprep.subr.mxu0 0.0
        %1247 = vmatpush2.msra.mxu0 0.0
        %1248 = vmatprep.subr.mxu0 0.0
        %1249 = vmatpush2.msra.mxu0 0.0
        %1250 = vmatprep.subr.mxu0 0.0
        %1251 = vmatpush2.msra.mxu0 0.0
        %1252 = vmatprep.subr.mxu0 0.0
        %1253 = vmatpush2.msra.mxu0 0.0
        %1254 = vmatprep.subr.mxu0 0.0
        %1255 = vmatpush2.msra.mxu0 0.0
        %1256 = vmatprep.subr.mxu0 0.0
        %1257 = vmatpush2.msra.mxu0 0.0
        %1258 = vmatprep.subr.mxu0 0.0
        %1259 = vmatpush2.msra.mxu0 0.0
        %1260 = vmatprep.subr.mxu0 0.0
        %1261 = vmatpush2.msra.mxu0 0.0
        %1262 = vmatprep.subr.mxu0 0.0
        %1263 = vmatpush2.msra.mxu0 0.0
        %1264 = vmatprep.subr.mxu0 0.0
        %1265 = vmatpush2.msra.mxu0 0.0
        %1266 = vmatprep.subr.mxu0 0.0
        %1267 = vmatpush2.msra.mxu0 0.0
        %1268 = vmatprep.subr.mxu0 0.0
        %1269 = vmatpush2.msra.mxu0 0.0
        %1270 = vmatprep.mubr.f32.mxu0 0.0
        %1271 = vmatmul.mubr.f32.gmra.mxu0 %v970
        %v1272 = vpop.f32.mrf.mxu0
        %v1273 = vadd.f32 %v962, %v1272
        %v1274 = vpop.f32.mrf.mxu0
        %v1275 = vadd.f32 %v962, %v1274
        %1276 = vmatprep.mubr.f32.mxu0 0.0
        %1277 = vmatmul.mubr.f32.gmra.mxu0 %v973
        %v1278 = vpop.f32.mrf.mxu0
        %v1279 = vadd.f32 %v967, %v1278
        %v1280 = vpop.f32.mrf.mxu0
        %v1281 = vadd.f32 %v967, %v1280
        %1282 = vdwg.mxu0
        %1283 = vmatprep.subr.mxu0 0.0
        %1284 = vmatpush1.msra.mxu0 0.0
        %1285 = vmatprep.subr.mxu0 0.0
        %1286 = vmatpush1.msra.mxu0 0.0
        %1287 = vmatprep.subr.mxu0 0.0
        %1288 = vmatpush1.msra.mxu0 0.0
        %1289 = vmatprep.subr.mxu0 0.0
        %1290 = vmatpush1.msra.mxu0 0.0
        %1291 = vmatprep.subr.mxu0 0.0
        %1292 = vmatpush1.msra.mxu0 0.0
        %1293 = vmatprep.subr.mxu0 0.0
        %1294 = vmatpush1.msra.mxu0 0.0
        %1295 = vmatprep.subr.mxu0 0.0
        %1296 = vmatpush1.msra.mxu0 0.0
        %1297 = vmatprep.subr.mxu0 0.0
        %1298 = vmatpush1.msra.mxu0 0.0
        %1299 = vmatprep.subr.mxu0 0.0
        %1300 = vmatpush1.msra.mxu0 0.0
        %1301 = vmatprep.subr.mxu0 0.0
        %1302 = vmatpush1.msra.mxu0 0.0
        %1303 = vmatprep.subr.mxu0 0.0
        %1304 = vmatpush1.msra.mxu0 0.0
        %1305 = vmatprep.subr.mxu0 0.0
        %1306 = vmatpush1.msra.mxu0 0.0
        %1307 = vmatprep.subr.mxu0 0.0
        %1308 = vmatpush1.msra.mxu0 0.0
        %1309 = vmatprep.subr.mxu0 0.0
        %1310 = vmatpush1.msra.mxu0 0.0
        %1311 = vmatprep.subr.mxu0 0.0
        %1312 = vmatpush1.msra.mxu0 0.0
        %1313 = vmatprep.subr.mxu0 %v325
        %1314 = vmatpush1.msra.mxu0 %v323
        %1315 = vmatprep.subr.mxu0 0.0
        %1316 = vmatpush2.msra.mxu0 0.0
        %1317 = vmatprep.subr.mxu0 0.0
        %1318 = vmatpush2.msra.mxu0 0.0
        %1319 = vmatprep.subr.mxu0 0.0
        %1320 = vmatpush2.msra.mxu0 0.0
        %1321 = vmatprep.subr.mxu0 0.0
        %1322 = vmatpush2.msra.mxu0 0.0
        %1323 = vmatprep.subr.mxu0 0.0
        %1324 = vmatpush2.msra.mxu0 0.0
        %1325 = vmatprep.subr.mxu0 0.0
        %1326 = vmatpush2.msra.mxu0 0.0
        %1327 = vmatprep.subr.mxu0 0.0
        %1328 = vmatpush2.msra.mxu0 0.0
        %1329 = vmatprep.subr.mxu0 0.0
        %1330 = vmatpush2.msra.mxu0 0.0
        %1331 = vmatprep.subr.mxu0 0.0
        %1332 = vmatpush2.msra.mxu0 0.0
        %1333 = vmatprep.subr.mxu0 0.0
        %1334 = vmatpush2.msra.mxu0 0.0
        %1335 = vmatprep.subr.mxu0 0.0
        %1336 = vmatpush2.msra.mxu0 0.0
        %1337 = vmatprep.subr.mxu0 0.0
        %1338 = vmatpush2.msra.mxu0 0.0
        %1339 = vmatprep.subr.mxu0 0.0
        %1340 = vmatpush2.msra.mxu0 0.0
        %1341 = vmatprep.subr.mxu0 0.0
        %1342 = vmatpush2.msra.mxu0 0.0
        %1343 = vmatprep.subr.mxu0 0.0
        %1344 = vmatpush2.msra.mxu0 0.0
        %1345 = vmatprep.subr.mxu0 0.0
        %1346 = vmatpush2.msra.mxu0 0.0
        %1347 = vmatprep.mubr.f32.mxu0 0.0
        %1348 = vmatmul.mubr.f32.gmra.mxu0 %v970
        %v1349 = vpop.f32.mrf.mxu0
        %v1350 = vadd.f32 %v962, %v1349
        %v1351 = vpop.f32.mrf.mxu0
        %v1352 = vadd.f32 %v962, %v1351
        %1353 = vmatprep.mubr.f32.mxu0 0.0
        %1354 = vmatmul.mubr.f32.gmra.mxu0 %v973
        %v1355 = vpop.f32.mrf.mxu0
        %v1356 = vadd.f32 %v967, %v1355
        %v1357 = vpop.f32.mrf.mxu0
        %v1358 = vadd.f32 %v967, %v1357
        %1359 = vdwg.mxu0
        %1360 = vmatprep.subr.mxu0 0.0
        %1361 = vmatpush1.msra.mxu0 0.0
        %1362 = vmatprep.subr.mxu0 0.0
        %1363 = vmatpush1.msra.mxu0 0.0
        %1364 = vmatprep.subr.mxu0 0.0
        %1365 = vmatpush1.msra.mxu0 0.0
        %1366 = vmatprep.subr.mxu0 0.0
        %1367 = vmatpush1.msra.mxu0 0.0
        %1368 = vmatprep.subr.mxu0 0.0
        %1369 = vmatpush1.msra.mxu0 0.0
        %1370 = vmatprep.subr.mxu0 0.0
        %1371 = vmatpush1.msra.mxu0 0.0
        %1372 = vmatprep.subr.mxu0 0.0
        %1373 = vmatpush1.msra.mxu0 0.0
        %1374 = vmatprep.subr.mxu0 0.0
        %1375 = vmatpush1.msra.mxu0 0.0
        %1376 = vmatprep.subr.mxu0 0.0
        %1377 = vmatpush1.msra.mxu0 0.0
        %1378 = vmatprep.subr.mxu0 0.0
        %1379 = vmatpush1.msra.mxu0 0.0
        %1380 = vmatprep.subr.mxu0 0.0
        %1381 = vmatpush1.msra.mxu0 0.0
        %1382 = vmatprep.subr.mxu0 0.0
        %1383 = vmatpush1.msra.mxu0 0.0
        %1384 = vmatprep.subr.mxu0 0.0
        %1385 = vmatpush1.msra.mxu0 0.0
        %1386 = vmatprep.subr.mxu0 0.0
        %1387 = vmatpush1.msra.mxu0 0.0
        %1388 = vmatprep.subr.mxu0 0.0
        %1389 = vmatpush1.msra.mxu0 0.0
        %1390 = vmatprep.subr.mxu0 %v329
        %1391 = vmatpush1.msra.mxu0 %v327
        %1392 = vmatprep.subr.mxu0 0.0
        %1393 = vmatpush2.msra.mxu0 0.0
        %1394 = vmatprep.subr.mxu0 0.0
        %1395 = vmatpush2.msra.mxu0 0.0
        %1396 = vmatprep.subr.mxu0 0.0
        %1397 = vmatpush2.msra.mxu0 0.0
        %1398 = vmatprep.subr.mxu0 0.0
        %1399 = vmatpush2.msra.mxu0 0.0
        %1400 = vmatprep.subr.mxu0 0.0
        %1401 = vmatpush2.msra.mxu0 0.0
        %1402 = vmatprep.subr.mxu0 0.0
        %1403 = vmatpush2.msra.mxu0 0.0
        %1404 = vmatprep.subr.mxu0 0.0
        %1405 = vmatpush2.msra.mxu0 0.0
        %1406 = vmatprep.subr.mxu0 0.0
        %1407 = vmatpush2.msra.mxu0 0.0
        %1408 = vmatprep.subr.mxu0 0.0
        %1409 = vmatpush2.msra.mxu0 0.0
        %1410 = vmatprep.subr.mxu0 0.0
        %1411 = vmatpush2.msra.mxu0 0.0
        %1412 = vmatprep.subr.mxu0 0.0
        %1413 = vmatpush2.msra.mxu0 0.0
        %1414 = vmatprep.subr.mxu0 0.0
        %1415 = vmatpush2.msra.mxu0 0.0
        %1416 = vmatprep.subr.mxu0 0.0
        %1417 = vmatpush2.msra.mxu0 0.0
        %1418 = vmatprep.subr.mxu0 0.0
        %1419 = vmatpush2.msra.mxu0 0.0
        %1420 = vmatprep.subr.mxu0 0.0
        %1421 = vmatpush2.msra.mxu0 0.0
        %1422 = vmatprep.subr.mxu0 0.0
        %1423 = vmatpush2.msra.mxu0 0.0
        %1424 = vmatprep.mubr.f32.mxu0 0.0
        %1425 = vmatmul.mubr.f32.gmra.mxu0 %v970
        %v1426 = vpop.f32.mrf.mxu0
        %v1427 = vadd.f32 %v962, %v1426
        %v1428 = vpop.f32.mrf.mxu0
        %v1429 = vadd.f32 %v962, %v1428
        %1430 = vmatprep.mubr.f32.mxu0 0.0
        %1431 = vmatmul.mubr.f32.gmra.mxu0 %v973
        %v1432 = vpop.f32.mrf.mxu0
        %v1433 = vadd.f32 %v967, %v1432
        %v1434 = vpop.f32.mrf.mxu0
        %v1435 = vadd.f32 %v967, %v1434
        %1436 = vdwg.mxu0
        %1437 = vmatprep.subr.mxu0 0.0
        %1438 = vmatpush1.msra.mxu0 0.0
        %1439 = vmatprep.subr.mxu0 0.0
        %1440 = vmatpush1.msra.mxu0 0.0
        %1441 = vmatprep.subr.mxu0 0.0
        %1442 = vmatpush1.msra.mxu0 0.0
        %1443 = vmatprep.subr.mxu0 0.0
        %1444 = vmatpush1.msra.mxu0 0.0
        %1445 = vmatprep.subr.mxu0 0.0
        %1446 = vmatpush1.msra.mxu0 0.0
        %1447 = vmatprep.subr.mxu0 0.0
        %1448 = vmatpush1.msra.mxu0 0.0
        %1449 = vmatprep.subr.mxu0 0.0
        %1450 = vmatpush1.msra.mxu0 0.0
        %1451 = vmatprep.subr.mxu0 0.0
        %1452 = vmatpush1.msra.mxu0 0.0
        %1453 = vmatprep.subr.mxu0 0.0
        %1454 = vmatpush1.msra.mxu0 0.0
        %1455 = vmatprep.subr.mxu0 0.0
        %1456 = vmatpush1.msra.mxu0 0.0
        %1457 = vmatprep.subr.mxu0 0.0
        %1458 = vmatpush1.msra.mxu0 0.0
        %1459 = vmatprep.subr.mxu0 0.0
        %1460 = vmatpush1.msra.mxu0 0.0
        %1461 = vmatprep.subr.mxu0 0.0
        %1462 = vmatpush1.msra.mxu0 0.0
        %1463 = vmatprep.subr.mxu0 0.0
        %1464 = vmatpush1.msra.mxu0 0.0
        %1465 = vmatprep.subr.mxu0 0.0
        %1466 = vmatpush1.msra.mxu0 0.0
        %1467 = vmatprep.subr.mxu0 %v333
        %1468 = vmatpush1.msra.mxu0 %v331
        %1469 = vmatprep.subr.mxu0 0.0
        %1470 = vmatpush2.msra.mxu0 0.0
        %1471 = vmatprep.subr.mxu0 0.0
        %1472 = vmatpush2.msra.mxu0 0.0
        %1473 = vmatprep.subr.mxu0 0.0
        %1474 = vmatpush2.msra.mxu0 0.0
        %1475 = vmatprep.subr.mxu0 0.0
        %1476 = vmatpush2.msra.mxu0 0.0
        %1477 = vmatprep.subr.mxu0 0.0
        %1478 = vmatpush2.msra.mxu0 0.0
        %1479 = vmatprep.subr.mxu0 0.0
        %1480 = vmatpush2.msra.mxu0 0.0
        %1481 = vmatprep.subr.mxu0 0.0
        %1482 = vmatpush2.msra.mxu0 0.0
        %1483 = vmatprep.subr.mxu0 0.0
        %1484 = vmatpush2.msra.mxu0 0.0
        %1485 = vmatprep.subr.mxu0 0.0
        %1486 = vmatpush2.msra.mxu0 0.0
        %1487 = vmatprep.subr.mxu0 0.0
        %1488 = vmatpush2.msra.mxu0 0.0
        %1489 = vmatprep.subr.mxu0 0.0
        %1490 = vmatpush2.msra.mxu0 0.0
        %1491 = vmatprep.subr.mxu0 0.0
        %1492 = vmatpush2.msra.mxu0 0.0
        %1493 = vmatprep.subr.mxu0 0.0
        %1494 = vmatpush2.msra.mxu0 0.0
        %1495 = vmatprep.subr.mxu0 0.0
        %1496 = vmatpush2.msra.mxu0 0.0
        %1497 = vmatprep.subr.mxu0 0.0
        %1498 = vmatpush2.msra.mxu0 0.0
        %1499 = vmatprep.subr.mxu0 0.0
        %1500 = vmatpush2.msra.mxu0 0.0
        %1501 = vmatprep.mubr.f32.mxu0 0.0
        %1502 = vmatmul.mubr.f32.gmra.mxu0 %v970
        %v1503 = vpop.f32.mrf.mxu0
        %v1504 = vadd.f32 %v962, %v1503
        %v1505 = vpop.f32.mrf.mxu0
        %v1506 = vadd.f32 %v962, %v1505
        %1507 = vmatprep.mubr.f32.mxu0 0.0
        %1508 = vmatmul.mubr.f32.gmra.mxu0 %v973
        %v1509 = vpop.f32.mrf.mxu0
        %v1510 = vadd.f32 %v967, %v1509
        %v1511 = vpop.f32.mrf.mxu0
        %v1512 = vadd.f32 %v967, %v1511
        %1513 = vdwg.mxu0
        %1514 = vmatprep.subr.mxu0 0.0
        %1515 = vmatpush1.msra.mxu0 0.0
        %1516 = vmatprep.subr.mxu0 0.0
        %1517 = vmatpush1.msra.mxu0 0.0
        %1518 = vmatprep.subr.mxu0 0.0
        %1519 = vmatpush1.msra.mxu0 0.0
        %1520 = vmatprep.subr.mxu0 0.0
        %1521 = vmatpush1.msra.mxu0 0.0
        %1522 = vmatprep.subr.mxu0 0.0
        %1523 = vmatpush1.msra.mxu0 0.0
        %1524 = vmatprep.subr.mxu0 0.0
        %1525 = vmatpush1.msra.mxu0 0.0
        %1526 = vmatprep.subr.mxu0 0.0
        %1527 = vmatpush1.msra.mxu0 0.0
        %1528 = vmatprep.subr.mxu0 0.0
        %1529 = vmatpush1.msra.mxu0 0.0
        %1530 = vmatprep.subr.mxu0 0.0
        %1531 = vmatpush1.msra.mxu0 0.0
        %1532 = vmatprep.subr.mxu0 0.0
        %1533 = vmatpush1.msra.mxu0 0.0
        %1534 = vmatprep.subr.mxu0 0.0
        %1535 = vmatpush1.msra.mxu0 0.0
        %1536 = vmatprep.subr.mxu0 0.0
        %1537 = vmatpush1.msra.mxu0 0.0
        %1538 = vmatprep.subr.mxu0 0.0
        %1539 = vmatpush1.msra.mxu0 0.0
        %1540 = vmatprep.subr.mxu0 0.0
        %1541 = vmatpush1.msra.mxu0 0.0
        %1542 = vmatprep.subr.mxu0 0.0
        %1543 = vmatpush1.msra.mxu0 0.0
        %1544 = vmatprep.subr.mxu0 %v337
        %1545 = vmatpush1.msra.mxu0 %v335
        %1546 = vmatprep.subr.mxu0 0.0
        %1547 = vmatpush2.msra.mxu0 0.0
        %1548 = vmatprep.subr.mxu0 0.0
        %1549 = vmatpush2.msra.mxu0 0.0
        %1550 = vmatprep.subr.mxu0 0.0
        %1551 = vmatpush2.msra.mxu0 0.0
        %1552 = vmatprep.subr.mxu0 0.0
        %1553 = vmatpush2.msra.mxu0 0.0
        %1554 = vmatprep.subr.mxu0 0.0
        %1555 = vmatpush2.msra.mxu0 0.0
        %1556 = vmatprep.subr.mxu0 0.0
        %1557 = vmatpush2.msra.mxu0 0.0
        %1558 = vmatprep.subr.mxu0 0.0
        %1559 = vmatpush2.msra.mxu0 0.0
        %1560 = vmatprep.subr.mxu0 0.0
        %1561 = vmatpush2.msra.mxu0 0.0
        %1562 = vmatprep.subr.mxu0 0.0
        %1563 = vmatpush2.msra.mxu0 0.0
        %1564 = vmatprep.subr.mxu0 0.0
        %1565 = vmatpush2.msra.mxu0 0.0
        %1566 = vmatprep.subr.mxu0 0.0
        %1567 = vmatpush2.msra.mxu0 0.0
        %1568 = vmatprep.subr.mxu0 0.0
        %1569 = vmatpush2.msra.mxu0 0.0
        %1570 = vmatprep.subr.mxu0 0.0
        %1571 = vmatpush2.msra.mxu0 0.0
        %1572 = vmatprep.subr.mxu0 0.0
        %1573 = vmatpush2.msra.mxu0 0.0
        %1574 = vmatprep.subr.mxu0 0.0
        %1575 = vmatpush2.msra.mxu0 0.0
        %1576 = vmatprep.subr.mxu0 0.0
        %1577 = vmatpush2.msra.mxu0 0.0
        %1578 = vmatprep.mubr.f32.mxu0 0.0
        %1579 = vmatmul.mubr.f32.gmra.mxu0 %v970
        %v1580 = vpop.f32.mrf.mxu0
        %v1581 = vadd.f32 %v962, %v1580
        %v1582 = vpop.f32.mrf.mxu0
        %v1583 = vadd.f32 %v962, %v1582
        %1584 = vmatprep.mubr.f32.mxu0 0.0
        %1585 = vmatmul.mubr.f32.gmra.mxu0 %v973
        %v1586 = vpop.f32.mrf.mxu0
        %v1587 = vadd.f32 %v967, %v1586
        %v1588 = vpop.f32.mrf.mxu0
        %v1589 = vadd.f32 %v967, %v1588
        %1590 = vdwg.mxu0
        %1591 = vst [vmem:[%s246] sm:$0xff] %v406
        %1592 = vst [vmem:[%s246 + $0x8] sm:$0xff] %v408
        %1593 = vst [vmem:[%s246 + $0x10] sm:$0xff] %v483
        %1594 = vst [vmem:[%s246 + $0x18] sm:$0xff] %v485
        %1595 = vst [vmem:[%s246 + $0x20] sm:$0xff] %v560
        %1596 = vst [vmem:[%s246 + $0x28] sm:$0xff] %v562
        %1597 = vst [vmem:[%s246 + $0x30] sm:$0xff] %v637
        %1598 = vst [vmem:[%s246 + $0x38] sm:$0xff] %v639
        %1599 = vst [vmem:[%s246 + $0x40] sm:$0xff] %v714
        %1600 = vst [vmem:[%s246 + $0x48] sm:$0xff] %v716
        %1601 = vst [vmem:[%s246 + $0x50] sm:$0xff] %v791
        %1602 = vst [vmem:[%s246 + $0x58] sm:$0xff] %v793
        %1603 = vst [vmem:[%s246 + $0x60] sm:$0xff] %v868
        %1604 = vst [vmem:[%s246 + $0x68] sm:$0xff] %v870
        %1605 = vst [vmem:[%s246 + $0x70] sm:$0xff] %v945
        %1606 = vst [vmem:[%s246 + $0x78] sm:$0xff] %v947
        %1607 = vst [vmem:[%s246 + $0x80] sm:$0xff] %v412
        %1608 = vst [vmem:[%s246 + $0x88] sm:$0xff] %v414
        %1609 = vst [vmem:[%s246 + $0x90] sm:$0xff] %v489
        %1610 = vst [vmem:[%s246 + $0x98] sm:$0xff] %v491
        %1611 = vst [vmem:[%s246 + $0xa0] sm:$0xff] %v566
        %1612 = vst [vmem:[%s246 + $0xa8] sm:$0xff] %v568
        %1613 = vst [vmem:[%s246 + $0xb0] sm:$0xff] %v643
        %1614 = vst [vmem:[%s246 + $0xb8] sm:$0xff] %v645
        %1615 = vst [vmem:[%s246 + $0xc0] sm:$0xff] %v720
        %1616 = vst [vmem:[%s246 + $0xc8] sm:$0xff] %v722
        %1617 = vst [vmem:[%s246 + $0xd0] sm:$0xff] %v797
        %1618 = vst [vmem:[%s246 + $0xd8] sm:$0xff] %v799
        %1619 = vst [vmem:[%s246 + $0xe0] sm:$0xff] %v874
        %1620 = vst [vmem:[%s246 + $0xe8] sm:$0xff] %v876
        %1621 = vst [vmem:[%s246 + $0xf0] sm:$0xff] %v951
        %1622 = vst [vmem:[%s246 + $0xf8] sm:$0xff] %v953
        %1623 = vst [vmem:[%s252] sm:$0xff] %v1042
        %1624 = vst [vmem:[%s252 + $0x8] sm:$0xff] %v1044
        %1625 = vst [vmem:[%s252 + $0x10] sm:$0xff] %v1119
        %1626 = vst [vmem:[%s252 + $0x18] sm:$0xff] %v1121
        %1627 = vst [vmem:[%s252 + $0x20] sm:$0xff] %v1196
        %1628 = vst [vmem:[%s252 + $0x28] sm:$0xff] %v1198
        %1629 = vst [vmem:[%s252 + $0x30] sm:$0xff] %v1273
        %1630 = vst [vmem:[%s252 + $0x38] sm:$0xff] %v1275
        %1631 = vst [vmem:[%s252 + $0x40] sm:$0xff] %v1350
        %1632 = vst [vmem:[%s252 + $0x48] sm:$0xff] %v1352
        %1633 = vst [vmem:[%s252 + $0x50] sm:$0xff] %v1427
        %1634 = vst [vmem:[%s252 + $0x58] sm:$0xff] %v1429
        %1635 = vst [vmem:[%s252 + $0x60] sm:$0xff] %v1504
        %1636 = vst [vmem:[%s252 + $0x68] sm:$0xff] %v1506
        %1637 = vst [vmem:[%s252 + $0x70] sm:$0xff] %v1581
        %1638 = vst [vmem:[%s252 + $0x78] sm:$0xff] %v1583
        %1639 = vst [vmem:[%s252 + $0x80] sm:$0xff] %v1048
        %1640 = vst [vmem:[%s252 + $0x88] sm:$0xff] %v1050
        %1641 = vst [vmem:[%s252 + $0x90] sm:$0xff] %v1125
        %1642 = vst [vmem:[%s252 + $0x98] sm:$0xff] %v1127
        %1643 = vst [vmem:[%s252 + $0xa0] sm:$0xff] %v1202
        %1644 = vst [vmem:[%s252 + $0xa8] sm:$0xff] %v1204
        %1645 = vst [vmem:[%s252 + $0xb0] sm:$0xff] %v1279
        %1646 = vst [vmem:[%s252 + $0xb8] sm:$0xff] %v1281
        %1647 = vst [vmem:[%s252 + $0xc0] sm:$0xff] %v1356
        %1648 = vst [vmem:[%s252 + $0xc8] sm:$0xff] %v1358
        %1649 = vst [vmem:[%s252 + $0xd0] sm:$0xff] %v1433
        %1650 = vst [vmem:[%s252 + $0xd8] sm:$0xff] %v1435
        %1651 = vst [vmem:[%s252 + $0xe0] sm:$0xff] %v1510
        %1652 = vst [vmem:[%s252 + $0xe8] sm:$0xff] %v1512
        %1653 = vst [vmem:[%s252 + $0xf0] sm:$0xff] %v1587
        %1654 = vst [vmem:[%s252 + $0xf8] sm:$0xff] %v1589
        %s1655 = sand.u32 %s139, 1
        %s1656 = scalar_lea.sflag [#allocation3], %s1655
        %s1657 = sand.u32 %s139, 1
        %s1658 = smul.addr %s1657, 256
        %s1659 = scalar_lea.vmem [#allocation2], %s1658
        %s1660 = sand.u32 %s165, 1
        %s1661 = sand.u32 %s165, 1
        %s1662 = smul.addr %s1661, 256
        %s1663 = scalar_lea.vmem [#allocation4], %s1662
        // Predicated region
        $region41: #{net3dseg_forward.1} parent=39 // pred_check
          %p1664 = pneg %p149
        $region42: #{net3dseg_forward.1} parent=39 // pred_check_branch
          %1666 = sbr.rel (%p1664) target = $region44
        $region43: #{net3dseg_forward.1} parent=39 // pred_region
          %s1667 = smul.u32 16, %s21
          %s1669 = ssub.s32 4096, 4096
          %1670 = vsyncadd %s1656, %s1669
          %s1671 = smul.addr %s1667, 128
          %s1672 = scalar_lea.hbm %s5, %s1671
          %s1673 = sshll.u32 %s1659, 4
          %s1674 = int_to_ptr.vmem [resolvable:$true] %s1673
          %1679 = dma.vmem_to_hbm [thread:$0]  %s1674, 4096, %s1672, %s1656, 2048, 4096, 128
        $region44: #{net3dseg_forward.1} parent=39 // pred_fallthru
          _
        // Predicated region
        $region45: #{net3dseg_forward.1} parent=39 // pred_check
          %p1680 = pneg %p175
        $region46: #{net3dseg_forward.1} parent=39 // pred_check_branch
          %1682 = sbr.rel (%p1680) target = $region48
        $region47: #{net3dseg_forward.1} parent=39 // pred_region
          %s1683 = smul.u32 16, %s21
          %s1684 = smul.addr %s1683, 8
          %s1685 = scalar_lea.vmem %s6, %s1684
          // Predicated region
          $region49: #{net3dseg_forward.1} parent=47 // pred_check
            _
          $region50: #{net3dseg_forward.1} parent=47 // pred_check_branch
            %1687 = sbr.rel (0) target = $region52
          $region51: #{net3dseg_forward.1} parent=47 // pred_region
            // Predicated region
            $region53: #{net3dseg_forward.1} parent=51 // pred_check
              _
            $region54: #{net3dseg_forward.1} parent=51 // pred_check_branch
              %1689 = sbr.rel (0) target = $region56
            $region55: #{net3dseg_forward.1} parent=51 // pred_region
              loop: start=0, step=1, limit=1
              $region57: #{net3dseg_forward.1} parent=55 // loop_pre_header
                _
              $region58: #{net3dseg_forward.1} parent=55 // loop_header
                %s1691 = sphi 0, %s1695
                %p1692 = scmp.ge.s32.totalorder %s1691, 1
                %s1696 = sphi %s1663, %s1663
                %s1697 = sphi %s1685, %s1685
              $region59: #{net3dseg_forward.1} parent=55 // loop_header_branch
                %1694 = sbr.rel (%p1692) target = $region63
              $region60: #{net3dseg_forward.1} parent=55 // loop_body
                %v1698 = vld [vmem:[%s1696] sm:$0xff]
                %1699 = vst [vmem:[%s1697] sm:$0xff] %v1698
                %v1700 = vld [vmem:[%s1696 + $0x8] sm:$0xff]
                %1701 = vst [vmem:[%s1697 + $0x8] sm:$0xff] %v1700
                %v1702 = vld [vmem:[%s1696 + $0x10] sm:$0xff]
                %1703 = vst [vmem:[%s1697 + $0x10] sm:$0xff] %v1702
                %v1704 = vld [vmem:[%s1696 + $0x18] sm:$0xff]
                %1705 = vst [vmem:[%s1697 + $0x18] sm:$0xff] %v1704
                %v1706 = vld [vmem:[%s1696 + $0x20] sm:$0xff]
                %1707 = vst [vmem:[%s1697 + $0x20] sm:$0xff] %v1706
                %v1708 = vld [vmem:[%s1696 + $0x28] sm:$0xff]
                %1709 = vst [vmem:[%s1697 + $0x28] sm:$0xff] %v1708
                %v1710 = vld [vmem:[%s1696 + $0x30] sm:$0xff]
                %1711 = vst [vmem:[%s1697 + $0x30] sm:$0xff] %v1710
                %v1712 = vld [vmem:[%s1696 + $0x38] sm:$0xff]
                %1713 = vst [vmem:[%s1697 + $0x38] sm:$0xff] %v1712
                %v1714 = vld [vmem:[%s1696 + $0x40] sm:$0xff]
                %1715 = vst [vmem:[%s1697 + $0x40] sm:$0xff] %v1714
                %v1716 = vld [vmem:[%s1696 + $0x48] sm:$0xff]
                %1717 = vst [vmem:[%s1697 + $0x48] sm:$0xff] %v1716
                %v1718 = vld [vmem:[%s1696 + $0x50] sm:$0xff]
                %1719 = vst [vmem:[%s1697 + $0x50] sm:$0xff] %v1718
                %v1720 = vld [vmem:[%s1696 + $0x58] sm:$0xff]
                %1721 = vst [vmem:[%s1697 + $0x58] sm:$0xff] %v1720
                %v1722 = vld [vmem:[%s1696 + $0x60] sm:$0xff]
                %1723 = vst [vmem:[%s1697 + $0x60] sm:$0xff] %v1722
                %v1724 = vld [vmem:[%s1696 + $0x68] sm:$0xff]
                %1725 = vst [vmem:[%s1697 + $0x68] sm:$0xff] %v1724
                %v1726 = vld [vmem:[%s1696 + $0x70] sm:$0xff]
                %1727 = vst [vmem:[%s1697 + $0x70] sm:$0xff] %v1726
                %v1728 = vld [vmem:[%s1696 + $0x78] sm:$0xff]
                %1729 = vst [vmem:[%s1697 + $0x78] sm:$0xff] %v1728
                %v1730 = vld [vmem:[%s1696 + $0x80] sm:$0xff]
                %1731 = vst [vmem:[%s1697 + $0x100] sm:$0xff] %v1730
                %v1732 = vld [vmem:[%s1696 + $0x88] sm:$0xff]
                %1733 = vst [vmem:[%s1697 + $0x108] sm:$0xff] %v1732
                %v1734 = vld [vmem:[%s1696 + $0x90] sm:$0xff]
                %1735 = vst [vmem:[%s1697 + $0x110] sm:$0xff] %v1734
                %v1736 = vld [vmem:[%s1696 + $0x98] sm:$0xff]
                %1737 = vst [vmem:[%s1697 + $0x118] sm:$0xff] %v1736
                %v1738 = vld [vmem:[%s1696 + $0xa0] sm:$0xff]
                %1739 = vst [vmem:[%s1697 + $0x120] sm:$0xff] %v1738
                %v1740 = vld [vmem:[%s1696 + $0xa8] sm:$0xff]
                %1741 = vst [vmem:[%s1697 + $0x128] sm:$0xff] %v1740
                %v1742 = vld [vmem:[%s1696 + $0xb0] sm:$0xff]
                %1743 = vst [vmem:[%s1697 + $0x130] sm:$0xff] %v1742
                %v1744 = vld [vmem:[%s1696 + $0xb8] sm:$0xff]
                %1745 = vst [vmem:[%s1697 + $0x138] sm:$0xff] %v1744
                %v1746 = vld [vmem:[%s1696 + $0xc0] sm:$0xff]
                %1747 = vst [vmem:[%s1697 + $0x140] sm:$0xff] %v1746
                %v1748 = vld [vmem:[%s1696 + $0xc8] sm:$0xff]
                %1749 = vst [vmem:[%s1697 + $0x148] sm:$0xff] %v1748
                %v1750 = vld [vmem:[%s1696 + $0xd0] sm:$0xff]
                %1751 = vst [vmem:[%s1697 + $0x150] sm:$0xff] %v1750
                %v1752 = vld [vmem:[%s1696 + $0xd8] sm:$0xff]
                %1753 = vst [vmem:[%s1697 + $0x158] sm:$0xff] %v1752
                %v1754 = vld [vmem:[%s1696 + $0xe0] sm:$0xff]
                %1755 = vst [vmem:[%s1697 + $0x160] sm:$0xff] %v1754
                %v1756 = vld [vmem:[%s1696 + $0xe8] sm:$0xff]
                %1757 = vst [vmem:[%s1697 + $0x168] sm:$0xff] %v1756
                %v1758 = vld [vmem:[%s1696 + $0xf0] sm:$0xff]
                %1759 = vst [vmem:[%s1697 + $0x170] sm:$0xff] %v1758
                %v1760 = vld [vmem:[%s1696 + $0xf8] sm:$0xff]
                %1761 = vst [vmem:[%s1697 + $0x178] sm:$0xff] %v1760
              $region61: #{net3dseg_forward.1} parent=55 // loop_footer
                %s1695 = sadd.s32 1, %s1691
              $region62: #{net3dseg_forward.1} parent=55 // loop_footer_branch
                %1690 = sbr.rel target = $region58
              $region63: #{net3dseg_forward.1} parent=55 // loop_exit
                _
            $region56: #{net3dseg_forward.1} parent=51 // pred_fallthru
              _
            // Predicated region
            $region64: #{net3dseg_forward.1} parent=51 // pred_check
              _
            $region65: #{net3dseg_forward.1} parent=51 // pred_check_branch
              %1763 = sbr.rel target = $region67
            $region66: #{net3dseg_forward.1} parent=51 // pred_region
              _
            $region67: #{net3dseg_forward.1} parent=51 // pred_fallthru
              _
          $region52: #{net3dseg_forward.1} parent=47 // pred_fallthru
            _
          %1764 = vnop
        $region48: #{net3dseg_forward.1} parent=39 // pred_fallthru
          _
      $region40: #{net3dseg_forward.1} parent=5 // pred_fallthru
        _
      %p1765 = scmp.le.s32.totalorder 2, %s16
      // Predicated region
      $region68: #{net3dseg_forward.1} parent=5 // pred_check
        %p1766 = pneg %p1765
      $region69: #{net3dseg_forward.1} parent=5 // pred_check_branch
        %1768 = sbr.rel (%p1766) target = $region71
      $region70: #{net3dseg_forward.1} parent=5 // pred_region
        %s1769 = ssub.s32 %s16, 2
        // Predicated region
        $region72: #{net3dseg_forward.1} parent=70 // pred_check
          %p1770 = pneg %p155
        $region73: #{net3dseg_forward.1} parent=70 // pred_check_branch
          %1772 = sbr.rel (%p1770) target = $region75
        $region74: #{net3dseg_forward.1} parent=70 // pred_region
          %s1773 = sand.u32 %s140, 1
          %s1774 = scalar_lea.sflag [#allocation3], %s1773
          %s1775 = sand.u32 %s140, 1
          %s1776 = smul.addr %s1775, 256
          %s1777 = scalar_lea.vmem [#allocation2], %s1776
          %1778 = dma.done %s1774, 4096
        $region75: #{net3dseg_forward.1} parent=70 // pred_fallthru
          _
        // Predicated region
        $region76: #{net3dseg_forward.1} parent=70 // pred_check
          %p1779 = pneg %p181
        $region77: #{net3dseg_forward.1} parent=70 // pred_check_branch
          %1781 = sbr.rel (%p1779) target = $region79
        $region78: #{net3dseg_forward.1} parent=70 // pred_region
          %s1782 = sand.u32 %s166, 1
          %s1783 = sand.u32 %s166, 1
          %s1784 = smul.addr %s1783, 256
          %s1785 = scalar_lea.vmem [#allocation4], %s1784
        $region79: #{net3dseg_forward.1} parent=70 // pred_fallthru
          _
      $region71: #{net3dseg_forward.1} parent=5 // pred_fallthru
        _
    $region6: #{net3dseg_forward.1} parent=1 // loop_footer
      %s20 = sadd.s32 1, %s16
    $region7: #{net3dseg_forward.1} parent=1 // loop_footer_branch
      %15 = sbr.rel target = $region3
    $region8: #{net3dseg_forward.1} parent=1 // loop_exit
      _
    %1786 = vsyncpa [#allocation3], 1
    %s1787 = scalar_lea.sflag [#allocation3], 1
    %1788 = vsyncpa %s1787, 1

</llo_original>
